<compile_context>
chip_gen: v7x
topology: tpu7x:2x2x1
jax: 0.10.0
libtpu: 0.0.40
codegen_flags: <defaults>
</compile_context>

<pallas_src>
import functools

import jax
import jax.numpy as jnp
from jax.experimental import pallas as pl
from jax.experimental.pallas import tpu as pltpu

EPS = 1e-5       # torch.nn.BatchNorm2d default eps
SLOPE = 0.05     # LeakyReLU negative slope used by the module
LANE = 128
TILE_M_MAX = 512  # 512-row tiles sit near the measured HBM-roofline sweet spot


def _round_up(x, m):
    return (x + m - 1) // m * m


# ----------------------------- Pallas kernels ------------------------------

def _stats_kernel(p_ref, w_ref, sum_ref, ssq_ref):
    """Pass 1: per-column sum / sumsq of y = P @ W, accumulated over M tiles."""
    @pl.when(pl.program_id(0) == 0)
    def _():
        sum_ref[...] = jnp.zeros_like(sum_ref)
        ssq_ref[...] = jnp.zeros_like(ssq_ref)

    y = jnp.dot(p_ref[...], w_ref[...], preferred_element_type=jnp.float32)
    sum_ref[...] += jnp.sum(y, axis=0, keepdims=True)
    ssq_ref[...] += jnp.sum(y * y, axis=0, keepdims=True)


def _apply_kernel(p_ref, w_ref, scale_ref, shift_ref, o_ref, *, act):
    """Pass 2: tile GEMM (bf16 -> f32 acc) + folded-BN FMA + activation."""
    y = jnp.dot(p_ref[...], w_ref[...], preferred_element_type=jnp.float32)
    y = y * scale_ref[...] + shift_ref[...]          # BN folded into one FMA
    if act == "leaky":
        y = jnp.where(y > 0, y, SLOPE * y)
    elif act == "tanh":
        y = jnp.tanh(y)
    o_ref[...] = y.astype(o_ref.dtype)


# --------------------------- pallas_call wrappers ---------------------------

def _tiles(m):
    # bf16 tiles pack (16, 128) -> keep the M tile a multiple of 16.
    tile_m = min(TILE_M_MAX, _round_up(m, 16))
    return tile_m, _round_up(m, tile_m)


def _pad2d(x, rows, cols):
    r, c = x.shape
    if r == rows and c == cols:
        return x
    return jnp.pad(x, ((0, rows - r), (0, cols - c)))


def _gemm_stats(patches_p, w_mat, tile_m):
    mp, kp = patches_p.shape
    cp = w_mat.shape[1]
    sums, ssq = pl.pallas_call(
        _stats_kernel,
        out_shape=(jax.ShapeDtypeStruct((1, cp), jnp.float32),
                   jax.ShapeDtypeStruct((1, cp), jnp.float32)),
        grid=(mp // tile_m,),
        in_specs=[pl.BlockSpec((tile_m, kp), lambda i: (i, 0)),
                  pl.BlockSpec((kp, cp), lambda i: (0, 0))],
        out_specs=(pl.BlockSpec((1, cp), lambda i: (0, 0)),
                   pl.BlockSpec((1, cp), lambda i: (0, 0))),
        compiler_params=pltpu.CompilerParams(
            dimension_semantics=("arbitrary",)),
    )(patches_p, w_mat)
    return sums[0], ssq[0]


def _gemm_apply(patches_p, w_mat, scale_col, shift_col, act, out_dtype, tile_m):
    mp, kp = patches_p.shape
    cp = w_mat.shape[1]
    kern = functools.partial(_apply_kernel, act=act)
    return pl.pallas_call(
        kern,
        out_shape=jax.ShapeDtypeStruct((mp, cp), out_dtype),
        grid=(mp // tile_m,),
        in_specs=[pl.BlockSpec((tile_m, kp), lambda i: (i, 0)),
                  pl.BlockSpec((kp, cp), lambda i: (0, 0)),
                  pl.BlockSpec((1, cp), lambda i: (0, 0)),
                  pl.BlockSpec((1, cp), lambda i: (0, 0))],
        out_specs=pl.BlockSpec((tile_m, cp), lambda i: (i, 0)),
        compiler_params=pltpu.CompilerParams(
            dimension_semantics=("parallel",)),   # megacore / 2-TC on v7x
    )(patches_p, w_mat, scale_col.reshape(1, cp), shift_col.reshape(1, cp))


# ------------------------------ JAX glue ------------------------------------

def im2col(x_nhwc, kh, kw, stride, pad):
    """-> (N*Ho*Wo, kh*kw*C), per-patch order [(i,j) major, C minor]."""
    n, h, w, c = x_nhwc.shape
    xp = jnp.pad(x_nhwc, ((0, 0), (pad, pad), (pad, pad), (0, 0)))
    ho = (h + 2 * pad - kh) // stride + 1
    wo = (w + 2 * pad - kw) // stride + 1
    cols = []
    for i in range(kh):
        for j in range(kw):
            cols.append(xp[:, i:i + ho * stride:stride, j:j + wo * stride:stride, :])
    patches = jnp.stack(cols, axis=3)                    # (N, Ho, Wo, kh*kw, C)
    return patches.reshape(n * ho * wo, kh * kw * c), ho, wo


def _prep_patches(x_nhwc, k, stride, pad, k_pad):
    patches, ho, wo = im2col(x_nhwc, k, k, stride, pad)
    m = patches.shape[0]
    tile_m, m_pad = _tiles(m)
    patches = _pad2d(patches.astype(jnp.bfloat16), m_pad, k_pad)
    return patches, m, ho, wo, tile_m


def _pixel_shuffle2(y, n, h, w, cout):
    """(N*H*W, 4*Cout) parity-major columns -> (N, 2H, 2W, Cout)."""
    y = y.reshape(n, h, w, 2, 2, cout)             # (.., dy, dx, co)
    y = jnp.transpose(y, (0, 1, 3, 2, 4, 5))       # (N, H, dy, W, dx, co)
    return y.reshape(n, 2 * h, 2 * w, cout)


def _bn_fold(sums, ssq, count, gamma, beta):
    mean = sums / count
    var = jnp.maximum(ssq / count - mean * mean, 0.0)   # biased (training-mode) var
    scale = gamma * jax.lax.rsqrt(var + EPS)
    shift = beta - mean * scale
    return scale, shift


def conv_bn_lrelu(x, lp, k, stride, pad):
    """Conv2d(k, stride, pad, bias=False) + BatchNorm2d(train) + LeakyReLU."""
    k_pad, cp = lp["w_mat"].shape
    cout = lp["gamma"].shape[0]
    patches, m, ho, wo, tile_m = _prep_patches(x, k, stride, pad, k_pad)

    sums, ssq = _gemm_stats(patches, lp["w_mat"], tile_m)
    scale, shift = _bn_fold(sums[:cout], ssq[:cout], float(m),
                            lp["gamma"], lp["beta"])
    scale_col = jnp.zeros((cp,), jnp.float32).at[:cout].set(scale)
    shift_col = jnp.zeros((cp,), jnp.float32).at[:cout].set(shift)

    y = _gemm_apply(patches, lp["w_mat"], scale_col, shift_col,
                    "leaky", jnp.bfloat16, tile_m)
    return y[:m, :cout].reshape(x.shape[0], ho, wo, cout)


def deconv_bn_lrelu(x, lp):
    """ConvTranspose2d(4, 2, 1, bias=False) + BN(train) + LeakyReLU (sub-pixel)."""
    k_pad, cp = lp["w_mat"].shape
    cout = lp["gamma"].shape[0]
    patches, m, ho, wo, tile_m = _prep_patches(x, 3, 1, 1, k_pad)

    sums, ssq = _gemm_stats(patches, lp["w_mat"], tile_m)
    # BN pools over all spatial positions => over M rows AND the 4 parities.
    s4 = sums[:4 * cout].reshape(4, cout).sum(axis=0)
    q4 = ssq[:4 * cout].reshape(4, cout).sum(axis=0)
    scale, shift = _bn_fold(s4, q4, float(4 * m), lp["gamma"], lp["beta"])
    scale_col = jnp.zeros((cp,), jnp.float32).at[:4 * cout].set(jnp.tile(scale, 4))
    shift_col = jnp.zeros((cp,), jnp.float32).at[:4 * cout].set(jnp.tile(shift, 4))

    y = _gemm_apply(patches, lp["w_mat"], scale_col, shift_col,
                    "leaky", jnp.bfloat16, tile_m)
    return _pixel_shuffle2(y[:m, :4 * cout], x.shape[0], ho, wo, cout)


def deconv_tanh(x, lp, cout):
    """ConvTranspose2d(4, 2, 1, bias=False) + Tanh (no BN), sub-pixel form."""
    k_pad, cp = lp["w_mat"].shape
    patches, m, ho, wo, tile_m = _prep_patches(x, 3, 1, 1, k_pad)
    ones = jnp.ones((cp,), jnp.float32)
    zeros = jnp.zeros((cp,), jnp.float32)
    y = _gemm_apply(patches, lp["w_mat"], ones, zeros,
                    "tanh", jnp.float32, tile_m)
    return _pixel_shuffle2(y[:m, :4 * cout], x.shape[0], ho, wo, cout)


# ----------------------- weight packing (done once) -------------------------

def _conv_w_mat(w, k_pad, c_pad):
    # torch Conv2d weight (Cout, Cin, kh, kw) -> (kh*kw*Cin, Cout), padded, bf16
    cout, cin, kh, kw = w.shape
    m = jnp.transpose(w, (2, 3, 1, 0)).reshape(kh * kw * cin, cout)
    return _pad2d(m, k_pad, c_pad).astype(jnp.bfloat16)


# sub-pixel tap map for k=4, stride=2, pad=1: for output parity d and input
# offset delta = a-1 in {-1,0,+1}, which transposed-conv tap contributes.
_KY = {0: {0: 3, 1: 1, 2: -1}, 1: {0: -1, 1: 2, 2: 0}}


def _deconv_subpixel_w_mat(w, k_pad, c_pad):
    # torch ConvTranspose2d weight (Cin, Cout, 4, 4) -> implicit 3x3 conv whose
    # 4*Cout columns (parity-major) are the four output parities (dy, dx).
    cin, cout, _, _ = w.shape
    mat = jnp.zeros((9, cin, 4, cout), jnp.float32)
    for dy in (0, 1):
        for dx in (0, 1):
            p = dy * 2 + dx
            for a in (0, 1, 2):
                ky = _KY[dy][a]
                if ky < 0:
                    continue
                for b in (0, 1, 2):
                    kx = _KY[dx][b]
                    if kx < 0:
                        continue
                    mat = mat.at[a * 3 + b, :, p, :].set(w[:, :, ky, kx])
    mat = mat.reshape(9 * cin, 4 * cout)
    return _pad2d(mat, k_pad, c_pad).astype(jnp.bfloat16)


def prepare_params(p):
    """Pack torch-layout params into padded bf16 GEMM operands ONCE (outside jit)."""
    def conv(w, g, b, k):
        cout, cin = w.shape[0], w.shape[1]
        k_pad = _round_up(k * k * cin, LANE)
        c_pad = _round_up(cout, LANE)
        return dict(w_mat=_conv_w_mat(w, k_pad, c_pad),
                    gamma=g.astype(jnp.float32), beta=b.astype(jnp.float32))

    def deconv(w, g=None, b=None):
        cin, cout = w.shape[0], w.shape[1]
        k_pad = _round_up(9 * cin, LANE)
        c_pad = _round_up(4 * cout, LANE)
        d = dict(w_mat=_deconv_subpixel_w_mat(w, k_pad, c_pad))
        if g is not None:
            d["gamma"] = g.astype(jnp.float32)
            d["beta"] = b.astype(jnp.float32)
        return d

    return {"l1": conv(p["w1"], p["g1"], p["b1"], 4),
            "l2": conv(p["w2"], p["g2"], p["b2"], 4),
            "l3": conv(p["w3"], p["g3"], p["b3"], 3),
            "l4": conv(p["w4"], p["g4"], p["b4"], 3),
            "l5": deconv(p["w5"], p["g5"], p["b5"]),
            "l6": deconv(p["w6"])}


# ------------------------------ model ---------------------------------------

def gan_a_forward(x_nchw, prep):
    x = jnp.transpose(x_nchw, (0, 2, 3, 1)).astype(jnp.bfloat16)        # -> NHWC
    x = conv_bn_lrelu(x, prep["l1"], 4, 2, 1)     # conv(1, cd, 4)      + BN + LeakyReLU
    x = conv_bn_lrelu(x, prep["l2"], 4, 2, 1)     # conv(cd, 2cd, 4)    + BN + LeakyReLU
    x = conv_bn_lrelu(x, prep["l3"], 3, 1, 1)     # conv(2cd, 2cd, 3,1,1)+BN + LeakyReLU
    x = conv_bn_lrelu(x, prep["l4"], 3, 1, 1)     # conv(2cd, 2cd, 3,1,1)+BN + LeakyReLU
    x = deconv_bn_lrelu(x, prep["l5"])            # deconv(2cd, cd, 4)  + BN + LeakyReLU
    x = deconv_tanh(x, prep["l6"], cout=3)        # deconv(cd, 3, 4, bn=False) + Tanh
    return jnp.transpose(x, (0, 3, 1, 2)).astype(jnp.float32)           # -> NCHW


def init_params(key, conv_dim):
    cd = conv_dim
    ks = jax.random.split(key, 16)

    def wgt(k, shape):
        fan_in = shape[1] * shape[2] * shape[3]
        return jax.random.normal(k, shape, jnp.float32) / jnp.sqrt(float(fan_in))

    def bn(kg, kb, c):
        g = 1.0 + 0.1 * jax.random.normal(kg, (c,), jnp.float32)
        b = 0.1 * jax.random.normal(kb, (c,), jnp.float32)
        return g, b

    p = {}
    p["w1"] = wgt(ks[0], (cd, 1, 4, 4));          p["g1"], p["b1"] = bn(ks[1], ks[2], cd)
    p["w2"] = wgt(ks[3], (2 * cd, cd, 4, 4));     p["g2"], p["b2"] = bn(ks[4], ks[5], 2 * cd)
    p["w3"] = wgt(ks[6], (2 * cd, 2 * cd, 3, 3)); p["g3"], p["b3"] = bn(ks[7], ks[8], 2 * cd)
    p["w4"] = wgt(ks[9], (2 * cd, 2 * cd, 3, 3)); p["g4"], p["b4"] = bn(ks[10], ks[11], 2 * cd)
    # ConvTranspose2d weights are (Cin, Cout, kh, kw)
    p["w5"] = wgt(ks[12], (2 * cd, cd, 4, 4));    p["g5"], p["b5"] = bn(ks[13], ks[14], cd)
    p["w6"] = wgt(ks[15], (cd, 3, 4, 4))
    return p


if __name__ == "__main__":
    key = jax.random.PRNGKey(0)
    kx, kp = jax.random.split(key)
    conv_dim = 16                                  # small stand-in for the default 64
    x = jax.random.normal(kx, (2, 1, 16, 16), jnp.float32)   # NCHW mnist-like input
    prep = prepare_params(init_params(kp, conv_dim))

    out = jax.jit(gan_a_forward)(x, prep)
    out = jax.block_until_ready(out)

    assert out.shape == (2, 3, 16, 16), out.shape
    assert bool(jnp.all(jnp.isfinite(out)))
    assert bool(jnp.all(jnp.abs(out) <= 1.0))      # tanh output range
    print("KERNEL_OK")
</pallas_src>

<mosaic_0001>
module attributes {stable_mosaic.version = 11 : i64} {
  func.func @_apply_kernel(%arg0: i32, %arg1: memref<128x128xbf16, #tpu.memory_space<vmem>>, %arg2: memref<128x128xbf16, #tpu.memory_space<vmem>>, %arg3: memref<1x128xf32, #tpu.memory_space<vmem>>, %arg4: memref<1x128xf32, #tpu.memory_space<vmem>>, %arg5: memref<128x128xbf16, #tpu.memory_space<vmem>>) attributes {dimension_semantics = [#tpu.dimension_semantics<parallel>], iteration_bounds = array<i64: 1>, scalar_prefetch = 0 : i64, scratch_operands = 0 : i64, tpu.core_type = #tpu.core_type<tc>, window_params = [{transform_indices = @transform_0, window_bounds = array<i64: 128, 128>}, {pipeline_mode = #tpu.pipeline_mode<synchronous>, transform_indices = @transform_1, window_bounds = array<i64: 128, 128>}, {pipeline_mode = #tpu.pipeline_mode<synchronous>, transform_indices = @transform_2, window_bounds = array<i64: 1, 128>}, {pipeline_mode = #tpu.pipeline_mode<synchronous>, transform_indices = @transform_3, window_bounds = array<i64: 1, 128>}, {transform_indices = @transform_4, window_bounds = array<i64: 128, 128>}]} {
    %c0 = arith.constant 0 : index
    %c0_0 = arith.constant 0 : index
    %0 = vector.load %arg1[%c0, %c0_0] : memref<128x128xbf16, #tpu.memory_space<vmem>>, vector<128x128xbf16>
    %c0_1 = arith.constant 0 : index
    %c0_2 = arith.constant 0 : index
    %1 = vector.load %arg2[%c0_1, %c0_2] : memref<128x128xbf16, #tpu.memory_space<vmem>>, vector<128x128xbf16>
    %cst = arith.constant dense<0.000000e+00> : vector<128x128xf32>
    %2 = tpu.matmul %0, %1, %cst {dimension_numbers = #tpu.dot_dimension_numbers<[1], [0], [0], [1], [0, 0, 1, 1], [], []>} : vector<128x128xbf16>, vector<128x128xbf16>, vector<128x128xf32> -> vector<128x128xf32>
    %c0_3 = arith.constant 0 : index
    %c0_4 = arith.constant 0 : index
    %3 = vector.load %arg3[%c0_3, %c0_4] : memref<1x128xf32, #tpu.memory_space<vmem>>, vector<1x128xf32>
    %4 = vector.broadcast %3 : vector<1x128xf32> to vector<128x128xf32>
    %5 = arith.mulf %2, %4 : vector<128x128xf32>
    %c0_5 = arith.constant 0 : index
    %c0_6 = arith.constant 0 : index
    %6 = vector.load %arg4[%c0_5, %c0_6] : memref<1x128xf32, #tpu.memory_space<vmem>>, vector<1x128xf32>
    %7 = vector.broadcast %6 : vector<1x128xf32> to vector<128x128xf32>
    %8 = arith.addf %5, %7 : vector<128x128xf32>
    %cst_7 = arith.constant 0.000000e+00 : f32
    %9 = vector.broadcast %cst_7 : f32 to vector<128x128xf32>
    %10 = arith.cmpf ogt, %8, %9 : vector<128x128xf32>
    %cst_8 = arith.constant 5.000000e-02 : f32
    %11 = vector.broadcast %cst_8 : f32 to vector<128x128xf32>
    %12 = arith.mulf %11, %8 : vector<128x128xf32>
    %13 = arith.select %10, %8, %12 : vector<128x128xi1>, vector<128x128xf32>
    %14 = arith.truncf %13 : vector<128x128xf32> to vector<128x128xbf16>
    %c0_9 = arith.constant 0 : index
    %c0_10 = arith.constant 0 : index
    %15 = vector.load %arg5[%c0_9, %c0_10] : memref<128x128xbf16, #tpu.memory_space<vmem>>, vector<128x128xbf16>
    tpu.vector_store %arg5[%c0_9, %c0_10], %14 {strides = array<i32>} : memref<128x128xbf16, #tpu.memory_space<vmem>>, vector<128x128xbf16>,
    return
  }
  func.func @transform_0(%arg0: i32) -> (i32, i32) {
    %c0_i32 = arith.constant 0 : i32
    %c0_i32_0 = arith.constant 0 : i32
    return %arg0, %c0_i32 : i32, i32
  }
  func.func @transform_1(%arg0: i32) -> (i32, i32) {
    %c0_i32 = arith.constant 0 : i32
    %c0_i32_0 = arith.constant 0 : i32
    %c0_i32_1 = arith.constant 0 : i32
    return %c0_i32, %c0_i32_0 : i32, i32
  }
  func.func @transform_2(%arg0: i32) -> (i32, i32) {
    %c0_i32 = arith.constant 0 : i32
    %c0_i32_0 = arith.constant 0 : i32
    %c0_i32_1 = arith.constant 0 : i32
    return %c0_i32, %c0_i32_0 : i32, i32
  }
  func.func @transform_3(%arg0: i32) -> (i32, i32) {
    %c0_i32 = arith.constant 0 : i32
    %c0_i32_0 = arith.constant 0 : i32
    %c0_i32_1 = arith.constant 0 : i32
    return %c0_i32, %c0_i32_0 : i32, i32
  }
  func.func @transform_4(%arg0: i32) -> (i32, i32) {
    %c0_i32 = arith.constant 0 : i32
    %c0_i32_0 = arith.constant 0 : i32
    return %arg0, %c0_i32 : i32, i32
  }
}

module attributes {stable_mosaic.version = 11 : i64} {
  func.func @_stats_kernel(%arg0: i32, %arg1: memref<128x128xbf16, #tpu.memory_space<vmem>>, %arg2: memref<128x128xbf16, #tpu.memory_space<vmem>>, %arg3: memref<1x128xf32, #tpu.memory_space<vmem>>, %arg4: memref<1x128xf32, #tpu.memory_space<vmem>>) attributes {dimension_semantics = [#tpu.dimension_semantics<arbitrary>], iteration_bounds = array<i64: 1>, scalar_prefetch = 0 : i64, scratch_operands = 0 : i64, tpu.core_type = #tpu.core_type<tc>, window_params = [{transform_indices = @transform_0, window_bounds = array<i64: 128, 128>}, {pipeline_mode = #tpu.pipeline_mode<synchronous>, transform_indices = @transform_1, window_bounds = array<i64: 128, 128>}, {pipeline_mode = #tpu.pipeline_mode<synchronous>, transform_indices = @transform_2, window_bounds = array<i64: 1, 128>}, {pipeline_mode = #tpu.pipeline_mode<synchronous>, transform_indices = @transform_3, window_bounds = array<i64: 1, 128>}]} {
    %c0_i32 = arith.constant 0 : i32
    %0 = arith.cmpi eq, %arg0, %c0_i32 : i32
    %1 = arith.extui %0 : i1 to i32
    %c0_i32_0 = arith.constant 0 : i32
    %2 = arith.cmpi ne, %1, %c0_i32_0 : i32
    scf.if %2 {
      %cst_14 = arith.constant 0.000000e+00 : f32
      %17 = vector.broadcast %cst_14 : f32 to vector<1x128xf32>
      %c0_15 = arith.constant 0 : index
      %c0_16 = arith.constant 0 : index
      %18 = vector.load %arg3[%c0_15, %c0_16] : memref<1x128xf32, #tpu.memory_space<vmem>>, vector<1x128xf32>
      tpu.vector_store %arg3[%c0_15, %c0_16], %17 {strides = array<i32>} : memref<1x128xf32, #tpu.memory_space<vmem>>, vector<1x128xf32>,
      %cst_17 = arith.constant 0.000000e+00 : f32
      %19 = vector.broadcast %cst_17 : f32 to vector<1x128xf32>
      %c0_18 = arith.constant 0 : index
      %c0_19 = arith.constant 0 : index
      %20 = vector.load %arg4[%c0_18, %c0_19] : memref<1x128xf32, #tpu.memory_space<vmem>>, vector<1x128xf32>
      tpu.vector_store %arg4[%c0_18, %c0_19], %19 {strides = array<i32>} : memref<1x128xf32, #tpu.memory_space<vmem>>, vector<1x128xf32>,
    } else {
    }
    %c0 = arith.constant 0 : index
    %c0_1 = arith.constant 0 : index
    %3 = vector.load %arg1[%c0, %c0_1] : memref<128x128xbf16, #tpu.memory_space<vmem>>, vector<128x128xbf16>
    %c0_2 = arith.constant 0 : index
    %c0_3 = arith.constant 0 : index
    %4 = vector.load %arg2[%c0_2, %c0_3] : memref<128x128xbf16, #tpu.memory_space<vmem>>, vector<128x128xbf16>
    %cst = arith.constant dense<0.000000e+00> : vector<128x128xf32>
    %5 = tpu.matmul %3, %4, %cst {dimension_numbers = #tpu.dot_dimension_numbers<[1], [0], [0], [1], [0, 0, 1, 1], [], []>} : vector<128x128xbf16>, vector<128x128xbf16>, vector<128x128xf32> -> vector<128x128xf32>
    %c0_4 = arith.constant 0 : index
    %c0_5 = arith.constant 0 : index
    %6 = vector.load %arg3[%c0_4, %c0_5] : memref<1x128xf32, #tpu.memory_space<vmem>>, vector<1x128xf32>
    %cst_6 = arith.constant dense<0.000000e+00> : vector<128xf32>
    %7 = vector.multi_reduction <add>, %5, %cst_6 [0] : vector<128x128xf32> to vector<128xf32>
    %8 = vector.shape_cast %7 : vector<128xf32> to vector<1x128xf32>
    %9 = arith.addf %6, %8 : vector<1x128xf32>
    %c0_7 = arith.constant 0 : index
    %c0_8 = arith.constant 0 : index
    %10 = vector.load %arg3[%c0_7, %c0_8] : memref<1x128xf32, #tpu.memory_space<vmem>>, vector<1x128xf32>
    tpu.vector_store %arg3[%c0_7, %c0_8], %9 {strides = array<i32>} : memref<1x128xf32, #tpu.memory_space<vmem>>, vector<1x128xf32>,
    %c0_9 = arith.constant 0 : index
    %c0_10 = arith.constant 0 : index
    %11 = vector.load %arg4[%c0_9, %c0_10] : memref<1x128xf32, #tpu.memory_space<vmem>>, vector<1x128xf32>
    %12 = arith.mulf %5, %5 : vector<128x128xf32>
    %cst_11 = arith.constant dense<0.000000e+00> : vector<128xf32>
    %13 = vector.multi_reduction <add>, %12, %cst_11 [0] : vector<128x128xf32> to vector<128xf32>
    %14 = vector.shape_cast %13 : vector<128xf32> to vector<1x128xf32>
    %15 = arith.addf %11, %14 : vector<1x128xf32>
    %c0_12 = arith.constant 0 : index
    %c0_13 = arith.constant 0 : index
    %16 = vector.load %arg4[%c0_12, %c0_13] : memref<1x128xf32, #tpu.memory_space<vmem>>, vector<1x128xf32>
    tpu.vector_store %arg4[%c0_12, %c0_13], %15 {strides = array<i32>} : memref<1x128xf32, #tpu.memory_space<vmem>>, vector<1x128xf32>,
    return
  }
  func.func @transform_0(%arg0: i32) -> (i32, i32) {
    %c0_i32 = arith.constant 0 : i32
    %c0_i32_0 = arith.constant 0 : i32
    return %arg0, %c0_i32 : i32, i32
  }
  func.func @transform_1(%arg0: i32) -> (i32, i32) {
    %c0_i32 = arith.constant 0 : i32
    %c0_i32_0 = arith.constant 0 : i32
    %c0_i32_1 = arith.constant 0 : i32
    return %c0_i32, %c0_i32_0 : i32, i32
  }
  func.func @transform_2(%arg0: i32) -> (i32, i32) {
    %c0_i32 = arith.constant 0 : i32
    %c0_i32_0 = arith.constant 0 : i32
    %c0_i32_1 = arith.constant 0 : i32
    return %c0_i32, %c0_i32_0 : i32, i32
  }
  func.func @transform_3(%arg0: i32) -> (i32, i32) {
    %c0_i32 = arith.constant 0 : i32
    %c0_i32_0 = arith.constant 0 : i32
    %c0_i32_1 = arith.constant 0 : i32
    return %c0_i32, %c0_i32_0 : i32, i32
  }
}

module attributes {stable_mosaic.version = 11 : i64} {
  func.func @_stats_kernel(%arg0: i32, %arg1: memref<32x256xbf16, #tpu.memory_space<vmem>>, %arg2: memref<256x128xbf16, #tpu.memory_space<vmem>>, %arg3: memref<1x128xf32, #tpu.memory_space<vmem>>, %arg4: memref<1x128xf32, #tpu.memory_space<vmem>>) attributes {dimension_semantics = [#tpu.dimension_semantics<arbitrary>], iteration_bounds = array<i64: 1>, scalar_prefetch = 0 : i64, scratch_operands = 0 : i64, tpu.core_type = #tpu.core_type<tc>, window_params = [{transform_indices = @transform_0, window_bounds = array<i64: 32, 256>}, {pipeline_mode = #tpu.pipeline_mode<synchronous>, transform_indices = @transform_1, window_bounds = array<i64: 256, 128>}, {pipeline_mode = #tpu.pipeline_mode<synchronous>, transform_indices = @transform_2, window_bounds = array<i64: 1, 128>}, {pipeline_mode = #tpu.pipeline_mode<synchronous>, transform_indices = @transform_3, window_bounds = array<i64: 1, 128>}]} {
    %c0_i32 = arith.constant 0 : i32
    %0 = arith.cmpi eq, %arg0, %c0_i32 : i32
    %1 = arith.extui %0 : i1 to i32
    %c0_i32_0 = arith.constant 0 : i32
    %2 = arith.cmpi ne, %1, %c0_i32_0 : i32
    scf.if %2 {
      %cst_14 = arith.constant 0.000000e+00 : f32
      %17 = vector.broadcast %cst_14 : f32 to vector<1x128xf32>
      %c0_15 = arith.constant 0 : index
      %c0_16 = arith.constant 0 : index
      %18 = vector.load %arg3[%c0_15, %c0_16] : memref<1x128xf32, #tpu.memory_space<vmem>>, vector<1x128xf32>
      tpu.vector_store %arg3[%c0_15, %c0_16], %17 {strides = array<i32>} : memref<1x128xf32, #tpu.memory_space<vmem>>, vector<1x128xf32>,
      %cst_17 = arith.constant 0.000000e+00 : f32
      %19 = vector.broadcast %cst_17 : f32 to vector<1x128xf32>
      %c0_18 = arith.constant 0 : index
      %c0_19 = arith.constant 0 : index
      %20 = vector.load %arg4[%c0_18, %c0_19] : memref<1x128xf32, #tpu.memory_space<vmem>>, vector<1x128xf32>
      tpu.vector_store %arg4[%c0_18, %c0_19], %19 {strides = array<i32>} : memref<1x128xf32, #tpu.memory_space<vmem>>, vector<1x128xf32>,
    } else {
    }
    %c0 = arith.constant 0 : index
    %c0_1 = arith.constant 0 : index
    %3 = vector.load %arg1[%c0, %c0_1] : memref<32x256xbf16, #tpu.memory_space<vmem>>, vector<32x256xbf16>
    %c0_2 = arith.constant 0 : index
    %c0_3 = arith.constant 0 : index
    %4 = vector.load %arg2[%c0_2, %c0_3] : memref<256x128xbf16, #tpu.memory_space<vmem>>, vector<256x128xbf16>
    %cst = arith.constant dense<0.000000e+00> : vector<32x128xf32>
    %5 = tpu.matmul %3, %4, %cst {dimension_numbers = #tpu.dot_dimension_numbers<[1], [0], [0], [1], [0, 0, 1, 1], [], []>} : vector<32x256xbf16>, vector<256x128xbf16>, vector<32x128xf32> -> vector<32x128xf32>
    %c0_4 = arith.constant 0 : index
    %c0_5 = arith.constant 0 : index
    %6 = vector.load %arg3[%c0_4, %c0_5] : memref<1x128xf32, #tpu.memory_space<vmem>>, vector<1x128xf32>
    %cst_6 = arith.constant dense<0.000000e+00> : vector<128xf32>
    %7 = vector.multi_reduction <add>, %5, %cst_6 [0] : vector<32x128xf32> to vector<128xf32>
    %8 = vector.shape_cast %7 : vector<128xf32> to vector<1x128xf32>
    %9 = arith.addf %6, %8 : vector<1x128xf32>
    %c0_7 = arith.constant 0 : index
    %c0_8 = arith.constant 0 : index
    %10 = vector.load %arg3[%c0_7, %c0_8] : memref<1x128xf32, #tpu.memory_space<vmem>>, vector<1x128xf32>
    tpu.vector_store %arg3[%c0_7, %c0_8], %9 {strides = array<i32>} : memref<1x128xf32, #tpu.memory_space<vmem>>, vector<1x128xf32>,
    %c0_9 = arith.constant 0 : index
    %c0_10 = arith.constant 0 : index
    %11 = vector.load %arg4[%c0_9, %c0_10] : memref<1x128xf32, #tpu.memory_space<vmem>>, vector<1x128xf32>
    %12 = arith.mulf %5, %5 : vector<32x128xf32>
    %cst_11 = arith.constant dense<0.000000e+00> : vector<128xf32>
    %13 = vector.multi_reduction <add>, %12, %cst_11 [0] : vector<32x128xf32> to vector<128xf32>
    %14 = vector.shape_cast %13 : vector<128xf32> to vector<1x128xf32>
    %15 = arith.addf %11, %14 : vector<1x128xf32>
    %c0_12 = arith.constant 0 : index
    %c0_13 = arith.constant 0 : index
    %16 = vector.load %arg4[%c0_12, %c0_13] : memref<1x128xf32, #tpu.memory_space<vmem>>, vector<1x128xf32>
    tpu.vector_store %arg4[%c0_12, %c0_13], %15 {strides = array<i32>} : memref<1x128xf32, #tpu.memory_space<vmem>>, vector<1x128xf32>,
    return
  }
  func.func @transform_0(%arg0: i32) -> (i32, i32) {
    %c0_i32 = arith.constant 0 : i32
    %c0_i32_0 = arith.constant 0 : i32
    return %arg0, %c0_i32 : i32, i32
  }
  func.func @transform_1(%arg0: i32) -> (i32, i32) {
    %c0_i32 = arith.constant 0 : i32
    %c0_i32_0 = arith.constant 0 : i32
    %c0_i32_1 = arith.constant 0 : i32
    return %c0_i32, %c0_i32_0 : i32, i32
  }
  func.func @transform_2(%arg0: i32) -> (i32, i32) {
    %c0_i32 = arith.constant 0 : i32
    %c0_i32_0 = arith.constant 0 : i32
    %c0_i32_1 = arith.constant 0 : i32
    return %c0_i32, %c0_i32_0 : i32, i32
  }
  func.func @transform_3(%arg0: i32) -> (i32, i32) {
    %c0_i32 = arith.constant 0 : i32
    %c0_i32_0 = arith.constant 0 : i32
    %c0_i32_1 = arith.constant 0 : i32
    return %c0_i32, %c0_i32_0 : i32, i32
  }
}

module attributes {stable_mosaic.version = 11 : i64} {
  func.func @_apply_kernel(%arg0: i32, %arg1: memref<32x256xbf16, #tpu.memory_space<vmem>>, %arg2: memref<256x128xbf16, #tpu.memory_space<vmem>>, %arg3: memref<1x128xf32, #tpu.memory_space<vmem>>, %arg4: memref<1x128xf32, #tpu.memory_space<vmem>>, %arg5: memref<32x128xbf16, #tpu.memory_space<vmem>>) attributes {dimension_semantics = [#tpu.dimension_semantics<parallel>], iteration_bounds = array<i64: 1>, scalar_prefetch = 0 : i64, scratch_operands = 0 : i64, tpu.core_type = #tpu.core_type<tc>, window_params = [{transform_indices = @transform_0, window_bounds = array<i64: 32, 256>}, {pipeline_mode = #tpu.pipeline_mode<synchronous>, transform_indices = @transform_1, window_bounds = array<i64: 256, 128>}, {pipeline_mode = #tpu.pipeline_mode<synchronous>, transform_indices = @transform_2, window_bounds = array<i64: 1, 128>}, {pipeline_mode = #tpu.pipeline_mode<synchronous>, transform_indices = @transform_3, window_bounds = array<i64: 1, 128>}, {transform_indices = @transform_4, window_bounds = array<i64: 32, 128>}]} {
    %c0 = arith.constant 0 : index
    %c0_0 = arith.constant 0 : index
    %0 = vector.load %arg1[%c0, %c0_0] : memref<32x256xbf16, #tpu.memory_space<vmem>>, vector<32x256xbf16>
    %c0_1 = arith.constant 0 : index
    %c0_2 = arith.constant 0 : index
    %1 = vector.load %arg2[%c0_1, %c0_2] : memref<256x128xbf16, #tpu.memory_space<vmem>>, vector<256x128xbf16>
    %cst = arith.constant dense<0.000000e+00> : vector<32x128xf32>
    %2 = tpu.matmul %0, %1, %cst {dimension_numbers = #tpu.dot_dimension_numbers<[1], [0], [0], [1], [0, 0, 1, 1], [], []>} : vector<32x256xbf16>, vector<256x128xbf16>, vector<32x128xf32> -> vector<32x128xf32>
    %c0_3 = arith.constant 0 : index
    %c0_4 = arith.constant 0 : index
    %3 = vector.load %arg3[%c0_3, %c0_4] : memref<1x128xf32, #tpu.memory_space<vmem>>, vector<1x128xf32>
    %4 = vector.broadcast %3 : vector<1x128xf32> to vector<32x128xf32>
    %5 = arith.mulf %2, %4 : vector<32x128xf32>
    %c0_5 = arith.constant 0 : index
    %c0_6 = arith.constant 0 : index
    %6 = vector.load %arg4[%c0_5, %c0_6] : memref<1x128xf32, #tpu.memory_space<vmem>>, vector<1x128xf32>
    %7 = vector.broadcast %6 : vector<1x128xf32> to vector<32x128xf32>
    %8 = arith.addf %5, %7 : vector<32x128xf32>
    %cst_7 = arith.constant 0.000000e+00 : f32
    %9 = vector.broadcast %cst_7 : f32 to vector<32x128xf32>
    %10 = arith.cmpf ogt, %8, %9 : vector<32x128xf32>
    %cst_8 = arith.constant 5.000000e-02 : f32
    %11 = vector.broadcast %cst_8 : f32 to vector<32x128xf32>
    %12 = arith.mulf %11, %8 : vector<32x128xf32>
    %13 = arith.select %10, %8, %12 : vector<32x128xi1>, vector<32x128xf32>
    %14 = arith.truncf %13 : vector<32x128xf32> to vector<32x128xbf16>
    %c0_9 = arith.constant 0 : index
    %c0_10 = arith.constant 0 : index
    %15 = vector.load %arg5[%c0_9, %c0_10] : memref<32x128xbf16, #tpu.memory_space<vmem>>, vector<32x128xbf16>
    tpu.vector_store %arg5[%c0_9, %c0_10], %14 {strides = array<i32>} : memref<32x128xbf16, #tpu.memory_space<vmem>>, vector<32x128xbf16>,
    return
  }
  func.func @transform_0(%arg0: i32) -> (i32, i32) {
    %c0_i32 = arith.constant 0 : i32
    %c0_i32_0 = arith.constant 0 : i32
    return %arg0, %c0_i32 : i32, i32
  }
  func.func @transform_1(%arg0: i32) -> (i32, i32) {
    %c0_i32 = arith.constant 0 : i32
    %c0_i32_0 = arith.constant 0 : i32
    %c0_i32_1 = arith.constant 0 : i32
    return %c0_i32, %c0_i32_0 : i32, i32
  }
  func.func @transform_2(%arg0: i32) -> (i32, i32) {
    %c0_i32 = arith.constant 0 : i32
    %c0_i32_0 = arith.constant 0 : i32
    %c0_i32_1 = arith.constant 0 : i32
    return %c0_i32, %c0_i32_0 : i32, i32
  }
  func.func @transform_3(%arg0: i32) -> (i32, i32) {
    %c0_i32 = arith.constant 0 : i32
    %c0_i32_0 = arith.constant 0 : i32
    %c0_i32_1 = arith.constant 0 : i32
    return %c0_i32, %c0_i32_0 : i32, i32
  }
  func.func @transform_4(%arg0: i32) -> (i32, i32) {
    %c0_i32 = arith.constant 0 : i32
    %c0_i32_0 = arith.constant 0 : i32
    return %arg0, %c0_i32 : i32, i32
  }
}

module attributes {stable_mosaic.version = 11 : i64} {
  func.func @_apply_kernel(%arg0: i32, %arg1: memref<32x384xbf16, #tpu.memory_space<vmem>>, %arg2: memref<384x128xbf16, #tpu.memory_space<vmem>>, %arg3: memref<1x128xf32, #tpu.memory_space<vmem>>, %arg4: memref<1x128xf32, #tpu.memory_space<vmem>>, %arg5: memref<32x128xbf16, #tpu.memory_space<vmem>>) attributes {dimension_semantics = [#tpu.dimension_semantics<parallel>], iteration_bounds = array<i64: 1>, scalar_prefetch = 0 : i64, scratch_operands = 0 : i64, tpu.core_type = #tpu.core_type<tc>, window_params = [{transform_indices = @transform_0, window_bounds = array<i64: 32, 384>}, {pipeline_mode = #tpu.pipeline_mode<synchronous>, transform_indices = @transform_1, window_bounds = array<i64: 384, 128>}, {pipeline_mode = #tpu.pipeline_mode<synchronous>, transform_indices = @transform_2, window_bounds = array<i64: 1, 128>}, {pipeline_mode = #tpu.pipeline_mode<synchronous>, transform_indices = @transform_3, window_bounds = array<i64: 1, 128>}, {transform_indices = @transform_4, window_bounds = array<i64: 32, 128>}]} {
    %c0 = arith.constant 0 : index
    %c0_0 = arith.constant 0 : index
    %0 = vector.load %arg1[%c0, %c0_0] : memref<32x384xbf16, #tpu.memory_space<vmem>>, vector<32x384xbf16>
    %c0_1 = arith.constant 0 : index
    %c0_2 = arith.constant 0 : index
    %1 = vector.load %arg2[%c0_1, %c0_2] : memref<384x128xbf16, #tpu.memory_space<vmem>>, vector<384x128xbf16>
    %cst = arith.constant dense<0.000000e+00> : vector<32x128xf32>
    %2 = tpu.matmul %0, %1, %cst {dimension_numbers = #tpu.dot_dimension_numbers<[1], [0], [0], [1], [0, 0, 1, 1], [], []>} : vector<32x384xbf16>, vector<384x128xbf16>, vector<32x128xf32> -> vector<32x128xf32>
    %c0_3 = arith.constant 0 : index
    %c0_4 = arith.constant 0 : index
    %3 = vector.load %arg3[%c0_3, %c0_4] : memref<1x128xf32, #tpu.memory_space<vmem>>, vector<1x128xf32>
    %4 = vector.broadcast %3 : vector<1x128xf32> to vector<32x128xf32>
    %5 = arith.mulf %2, %4 : vector<32x128xf32>
    %c0_5 = arith.constant 0 : index
    %c0_6 = arith.constant 0 : index
    %6 = vector.load %arg4[%c0_5, %c0_6] : memref<1x128xf32, #tpu.memory_space<vmem>>, vector<1x128xf32>
    %7 = vector.broadcast %6 : vector<1x128xf32> to vector<32x128xf32>
    %8 = arith.addf %5, %7 : vector<32x128xf32>
    %cst_7 = arith.constant 0.000000e+00 : f32
    %9 = vector.broadcast %cst_7 : f32 to vector<32x128xf32>
    %10 = arith.cmpf ogt, %8, %9 : vector<32x128xf32>
    %cst_8 = arith.constant 5.000000e-02 : f32
    %11 = vector.broadcast %cst_8 : f32 to vector<32x128xf32>
    %12 = arith.mulf %11, %8 : vector<32x128xf32>
    %13 = arith.select %10, %8, %12 : vector<32x128xi1>, vector<32x128xf32>
    %14 = arith.truncf %13 : vector<32x128xf32> to vector<32x128xbf16>
    %c0_9 = arith.constant 0 : index
    %c0_10 = arith.constant 0 : index
    %15 = vector.load %arg5[%c0_9, %c0_10] : memref<32x128xbf16, #tpu.memory_space<vmem>>, vector<32x128xbf16>
    tpu.vector_store %arg5[%c0_9, %c0_10], %14 {strides = array<i32>} : memref<32x128xbf16, #tpu.memory_space<vmem>>, vector<32x128xbf16>,
    return
  }
  func.func @transform_0(%arg0: i32) -> (i32, i32) {
    %c0_i32 = arith.constant 0 : i32
    %c0_i32_0 = arith.constant 0 : i32
    return %arg0, %c0_i32 : i32, i32
  }
  func.func @transform_1(%arg0: i32) -> (i32, i32) {
    %c0_i32 = arith.constant 0 : i32
    %c0_i32_0 = arith.constant 0 : i32
    %c0_i32_1 = arith.constant 0 : i32
    return %c0_i32, %c0_i32_0 : i32, i32
  }
  func.func @transform_2(%arg0: i32) -> (i32, i32) {
    %c0_i32 = arith.constant 0 : i32
    %c0_i32_0 = arith.constant 0 : i32
    %c0_i32_1 = arith.constant 0 : i32
    return %c0_i32, %c0_i32_0 : i32, i32
  }
  func.func @transform_3(%arg0: i32) -> (i32, i32) {
    %c0_i32 = arith.constant 0 : i32
    %c0_i32_0 = arith.constant 0 : i32
    %c0_i32_1 = arith.constant 0 : i32
    return %c0_i32, %c0_i32_0 : i32, i32
  }
  func.func @transform_4(%arg0: i32) -> (i32, i32) {
    %c0_i32 = arith.constant 0 : i32
    %c0_i32_0 = arith.constant 0 : i32
    return %arg0, %c0_i32 : i32, i32
  }
}

module attributes {stable_mosaic.version = 11 : i64} {
  func.func @_stats_kernel(%arg0: i32, %arg1: memref<32x384xbf16, #tpu.memory_space<vmem>>, %arg2: memref<384x128xbf16, #tpu.memory_space<vmem>>, %arg3: memref<1x128xf32, #tpu.memory_space<vmem>>, %arg4: memref<1x128xf32, #tpu.memory_space<vmem>>) attributes {dimension_semantics = [#tpu.dimension_semantics<arbitrary>], iteration_bounds = array<i64: 1>, scalar_prefetch = 0 : i64, scratch_operands = 0 : i64, tpu.core_type = #tpu.core_type<tc>, window_params = [{transform_indices = @transform_0, window_bounds = array<i64: 32, 384>}, {pipeline_mode = #tpu.pipeline_mode<synchronous>, transform_indices = @transform_1, window_bounds = array<i64: 384, 128>}, {pipeline_mode = #tpu.pipeline_mode<synchronous>, transform_indices = @transform_2, window_bounds = array<i64: 1, 128>}, {pipeline_mode = #tpu.pipeline_mode<synchronous>, transform_indices = @transform_3, window_bounds = array<i64: 1, 128>}]} {
    %c0_i32 = arith.constant 0 : i32
    %0 = arith.cmpi eq, %arg0, %c0_i32 : i32
    %1 = arith.extui %0 : i1 to i32
    %c0_i32_0 = arith.constant 0 : i32
    %2 = arith.cmpi ne, %1, %c0_i32_0 : i32
    scf.if %2 {
      %cst_14 = arith.constant 0.000000e+00 : f32
      %17 = vector.broadcast %cst_14 : f32 to vector<1x128xf32>
      %c0_15 = arith.constant 0 : index
      %c0_16 = arith.constant 0 : index
      %18 = vector.load %arg3[%c0_15, %c0_16] : memref<1x128xf32, #tpu.memory_space<vmem>>, vector<1x128xf32>
      tpu.vector_store %arg3[%c0_15, %c0_16], %17 {strides = array<i32>} : memref<1x128xf32, #tpu.memory_space<vmem>>, vector<1x128xf32>,
      %cst_17 = arith.constant 0.000000e+00 : f32
      %19 = vector.broadcast %cst_17 : f32 to vector<1x128xf32>
      %c0_18 = arith.constant 0 : index
      %c0_19 = arith.constant 0 : index
      %20 = vector.load %arg4[%c0_18, %c0_19] : memref<1x128xf32, #tpu.memory_space<vmem>>, vector<1x128xf32>
      tpu.vector_store %arg4[%c0_18, %c0_19], %19 {strides = array<i32>} : memref<1x128xf32, #tpu.memory_space<vmem>>, vector<1x128xf32>,
    } else {
    }
    %c0 = arith.constant 0 : index
    %c0_1 = arith.constant 0 : index
    %3 = vector.load %arg1[%c0, %c0_1] : memref<32x384xbf16, #tpu.memory_space<vmem>>, vector<32x384xbf16>
    %c0_2 = arith.constant 0 : index
    %c0_3 = arith.constant 0 : index
    %4 = vector.load %arg2[%c0_2, %c0_3] : memref<384x128xbf16, #tpu.memory_space<vmem>>, vector<384x128xbf16>
    %cst = arith.constant dense<0.000000e+00> : vector<32x128xf32>
    %5 = tpu.matmul %3, %4, %cst {dimension_numbers = #tpu.dot_dimension_numbers<[1], [0], [0], [1], [0, 0, 1, 1], [], []>} : vector<32x384xbf16>, vector<384x128xbf16>, vector<32x128xf32> -> vector<32x128xf32>
    %c0_4 = arith.constant 0 : index
    %c0_5 = arith.constant 0 : index
    %6 = vector.load %arg3[%c0_4, %c0_5] : memref<1x128xf32, #tpu.memory_space<vmem>>, vector<1x128xf32>
    %cst_6 = arith.constant dense<0.000000e+00> : vector<128xf32>
    %7 = vector.multi_reduction <add>, %5, %cst_6 [0] : vector<32x128xf32> to vector<128xf32>
    %8 = vector.shape_cast %7 : vector<128xf32> to vector<1x128xf32>
    %9 = arith.addf %6, %8 : vector<1x128xf32>
    %c0_7 = arith.constant 0 : index
    %c0_8 = arith.constant 0 : index
    %10 = vector.load %arg3[%c0_7, %c0_8] : memref<1x128xf32, #tpu.memory_space<vmem>>, vector<1x128xf32>
    tpu.vector_store %arg3[%c0_7, %c0_8], %9 {strides = array<i32>} : memref<1x128xf32, #tpu.memory_space<vmem>>, vector<1x128xf32>,
    %c0_9 = arith.constant 0 : index
    %c0_10 = arith.constant 0 : index
    %11 = vector.load %arg4[%c0_9, %c0_10] : memref<1x128xf32, #tpu.memory_space<vmem>>, vector<1x128xf32>
    %12 = arith.mulf %5, %5 : vector<32x128xf32>
    %cst_11 = arith.constant dense<0.000000e+00> : vector<128xf32>
    %13 = vector.multi_reduction <add>, %12, %cst_11 [0] : vector<32x128xf32> to vector<128xf32>
    %14 = vector.shape_cast %13 : vector<128xf32> to vector<1x128xf32>
    %15 = arith.addf %11, %14 : vector<1x128xf32>
    %c0_12 = arith.constant 0 : index
    %c0_13 = arith.constant 0 : index
    %16 = vector.load %arg4[%c0_12, %c0_13] : memref<1x128xf32, #tpu.memory_space<vmem>>, vector<1x128xf32>
    tpu.vector_store %arg4[%c0_12, %c0_13], %15 {strides = array<i32>} : memref<1x128xf32, #tpu.memory_space<vmem>>, vector<1x128xf32>,
    return
  }
  func.func @transform_0(%arg0: i32) -> (i32, i32) {
    %c0_i32 = arith.constant 0 : i32
    %c0_i32_0 = arith.constant 0 : i32
    return %arg0, %c0_i32 : i32, i32
  }
  func.func @transform_1(%arg0: i32) -> (i32, i32) {
    %c0_i32 = arith.constant 0 : i32
    %c0_i32_0 = arith.constant 0 : i32
    %c0_i32_1 = arith.constant 0 : i32
    return %c0_i32, %c0_i32_0 : i32, i32
  }
  func.func @transform_2(%arg0: i32) -> (i32, i32) {
    %c0_i32 = arith.constant 0 : i32
    %c0_i32_0 = arith.constant 0 : i32
    %c0_i32_1 = arith.constant 0 : i32
    return %c0_i32, %c0_i32_0 : i32, i32
  }
  func.func @transform_3(%arg0: i32) -> (i32, i32) {
    %c0_i32 = arith.constant 0 : i32
    %c0_i32_0 = arith.constant 0 : i32
    %c0_i32_1 = arith.constant 0 : i32
    return %c0_i32, %c0_i32_0 : i32, i32
  }
}

module attributes {stable_mosaic.version = 11 : i64} {
  func.func @_apply_kernel(%arg0: i32, %arg1: memref<128x256xbf16, #tpu.memory_space<vmem>>, %arg2: memref<256x128xbf16, #tpu.memory_space<vmem>>, %arg3: memref<1x128xf32, #tpu.memory_space<vmem>>, %arg4: memref<1x128xf32, #tpu.memory_space<vmem>>, %arg5: memref<128x128xf32, #tpu.memory_space<vmem>>) attributes {dimension_semantics = [#tpu.dimension_semantics<parallel>], iteration_bounds = array<i64: 1>, scalar_prefetch = 0 : i64, scratch_operands = 0 : i64, tpu.core_type = #tpu.core_type<tc>, window_params = [{transform_indices = @transform_0, window_bounds = array<i64: 128, 256>}, {pipeline_mode = #tpu.pipeline_mode<synchronous>, transform_indices = @transform_1, window_bounds = array<i64: 256, 128>}, {pipeline_mode = #tpu.pipeline_mode<synchronous>, transform_indices = @transform_2, window_bounds = array<i64: 1, 128>}, {pipeline_mode = #tpu.pipeline_mode<synchronous>, transform_indices = @transform_3, window_bounds = array<i64: 1, 128>}, {transform_indices = @transform_4, window_bounds = array<i64: 128, 128>}]} {
    %c0 = arith.constant 0 : index
    %c0_0 = arith.constant 0 : index
    %0 = vector.load %arg1[%c0, %c0_0] : memref<128x256xbf16, #tpu.memory_space<vmem>>, vector<128x256xbf16>
    %c0_1 = arith.constant 0 : index
    %c0_2 = arith.constant 0 : index
    %1 = vector.load %arg2[%c0_1, %c0_2] : memref<256x128xbf16, #tpu.memory_space<vmem>>, vector<256x128xbf16>
    %cst = arith.constant dense<0.000000e+00> : vector<128x128xf32>
    %2 = tpu.matmul %0, %1, %cst {dimension_numbers = #tpu.dot_dimension_numbers<[1], [0], [0], [1], [0, 0, 1, 1], [], []>} : vector<128x256xbf16>, vector<256x128xbf16>, vector<128x128xf32> -> vector<128x128xf32>
    %c0_3 = arith.constant 0 : index
    %c0_4 = arith.constant 0 : index
    %3 = vector.load %arg3[%c0_3, %c0_4] : memref<1x128xf32, #tpu.memory_space<vmem>>, vector<1x128xf32>
    %4 = vector.broadcast %3 : vector<1x128xf32> to vector<128x128xf32>
    %5 = arith.mulf %2, %4 : vector<128x128xf32>
    %c0_5 = arith.constant 0 : index
    %c0_6 = arith.constant 0 : index
    %6 = vector.load %arg4[%c0_5, %c0_6] : memref<1x128xf32, #tpu.memory_space<vmem>>, vector<1x128xf32>
    %7 = vector.broadcast %6 : vector<1x128xf32> to vector<128x128xf32>
    %8 = arith.addf %5, %7 : vector<128x128xf32>
    %9 = math.tanh %8 : vector<128x128xf32>
    %c0_7 = arith.constant 0 : index
    %c0_8 = arith.constant 0 : index
    %10 = vector.load %arg5[%c0_7, %c0_8] : memref<128x128xf32, #tpu.memory_space<vmem>>, vector<128x128xf32>
    tpu.vector_store %arg5[%c0_7, %c0_8], %9 {strides = array<i32>} : memref<128x128xf32, #tpu.memory_space<vmem>>, vector<128x128xf32>,
    return
  }
  func.func @transform_0(%arg0: i32) -> (i32, i32) {
    %c0_i32 = arith.constant 0 : i32
    %c0_i32_0 = arith.constant 0 : i32
    return %arg0, %c0_i32 : i32, i32
  }
  func.func @transform_1(%arg0: i32) -> (i32, i32) {
    %c0_i32 = arith.constant 0 : i32
    %c0_i32_0 = arith.constant 0 : i32
    %c0_i32_1 = arith.constant 0 : i32
    return %c0_i32, %c0_i32_0 : i32, i32
  }
  func.func @transform_2(%arg0: i32) -> (i32, i32) {
    %c0_i32 = arith.constant 0 : i32
    %c0_i32_0 = arith.constant 0 : i32
    %c0_i32_1 = arith.constant 0 : i32
    return %c0_i32, %c0_i32_0 : i32, i32
  }
  func.func @transform_3(%arg0: i32) -> (i32, i32) {
    %c0_i32 = arith.constant 0 : i32
    %c0_i32_0 = arith.constant 0 : i32
    %c0_i32_1 = arith.constant 0 : i32
    return %c0_i32, %c0_i32_0 : i32, i32
  }
  func.func @transform_4(%arg0: i32) -> (i32, i32) {
    %c0_i32 = arith.constant 0 : i32
    %c0_i32_0 = arith.constant 0 : i32
    return %arg0, %c0_i32 : i32, i32
  }
}

</mosaic_0001>

<llo_original>
// kernel: gan_a_forward.12
$region0: #{gan_a_forward.12}
  #allocation0 [shape = 'u32[]', space=smem, size = 0x4, offset = 0x4, fixed_abs, tag = 'smem constant byte address 0x4 - core index']
  #allocation1 [shape = 'u32[144,128]{1,0:T(1,128)}', space=vmem, size = 0x12000, scoped, tag = 'internal scratch']
  %s0 = inlined_call_operand.vmem [shape: bf16[128,128], index: 0, kind: input, shape index: {}]
  %s1 = inlined_call_operand.vmem [shape: bf16[128,128], index: 1, kind: input, shape index: {}]
  %s2 = inlined_call_operand.vmem [shape: f32[1,128], index: 2, kind: input, shape index: {}]
  %s3 = inlined_call_operand.vmem [shape: f32[1,128], index: 3, kind: input, shape index: {}]
  %s4 = inlined_call_operand.vmem [shape: bf16[128,128], index: 4, kind: output, shape index: {}]
  %s5 = sld [smem:[#allocation0]]
  $region26: #{gan_a_forward.12} parent=0
    _
  %s7 = ssub.s32 1, %s5
  %s8 = scalar_select 0, %s7, %s5
  // Predicated region
  $region2: #{gan_a_forward.12} parent=0 // pred_check
    _
  $region3: #{gan_a_forward.12} parent=0 // pred_check_branch
    %10 = sbr.rel (0) target = $region5
  $region4: #{gan_a_forward.12} parent=0 // pred_region
    _
  $region5: #{gan_a_forward.12} parent=0 // pred_fallthru
    _
  // Predicated region
  $region6: #{gan_a_forward.12} parent=0 // pred_check
    _
  $region7: #{gan_a_forward.12} parent=0 // pred_check_branch
    %12 = sbr.rel (0) target = $region9
  $region8: #{gan_a_forward.12} parent=0 // pred_region
    _
  $region9: #{gan_a_forward.12} parent=0 // pred_fallthru
    _
  // Predicated region
  $region10: #{gan_a_forward.12} parent=0 // pred_check
    _
  $region11: #{gan_a_forward.12} parent=0 // pred_check_branch
    %14 = sbr.rel (0) target = $region13
  $region12: #{gan_a_forward.12} parent=0 // pred_region
    _
  $region13: #{gan_a_forward.12} parent=0 // pred_fallthru
    _
  // Predicated region
  $region14: #{gan_a_forward.12} parent=0 // pred_check
    _
  $region15: #{gan_a_forward.12} parent=0 // pred_check_branch
    %16 = sbr.rel (0) target = $region17
  $region16: #{gan_a_forward.12} parent=0 // pred_region
    _
  $region17: #{gan_a_forward.12} parent=0 // pred_fallthru
    _
  %v18 = vld [vmem:[%s0] sm:$0xf]
  %v19 = vld [vmem:[%s0 + $0x4] sm:$0xf]
  %v20 = vld [vmem:[%s0 + $0x8] sm:$0xf]
  %v21 = vld [vmem:[%s0 + $0xc] sm:$0xf]
  %v22 = vld [vmem:[%s0 + $0x10] sm:$0xf]
  %v23 = vld [vmem:[%s0 + $0x14] sm:$0xf]
  %v24 = vld [vmem:[%s0 + $0x18] sm:$0xf]
  %v25 = vld [vmem:[%s0 + $0x1c] sm:$0xf]
  %v26 = vld [vmem:[%s0 + $0x20] sm:$0xf]
  %v27 = vld [vmem:[%s0 + $0x24] sm:$0xf]
  %v28 = vld [vmem:[%s0 + $0x28] sm:$0xf]
  %v29 = vld [vmem:[%s0 + $0x2c] sm:$0xf]
  %v30 = vld [vmem:[%s0 + $0x30] sm:$0xf]
  %v31 = vld [vmem:[%s0 + $0x34] sm:$0xf]
  %v32 = vld [vmem:[%s0 + $0x38] sm:$0xf]
  %v33 = vld [vmem:[%s0 + $0x3c] sm:$0xf]
  %v34 = vld [vmem:[%s1] sm:$0xf]
  %v35 = vld [vmem:[%s1 + $0x4] sm:$0xf]
  %v36 = vld [vmem:[%s1 + $0x8] sm:$0xf]
  %v37 = vld [vmem:[%s1 + $0xc] sm:$0xf]
  %v38 = vld [vmem:[%s1 + $0x10] sm:$0xf]
  %v39 = vld [vmem:[%s1 + $0x14] sm:$0xf]
  %v40 = vld [vmem:[%s1 + $0x18] sm:$0xf]
  %v41 = vld [vmem:[%s1 + $0x1c] sm:$0xf]
  %v42 = vld [vmem:[%s1 + $0x20] sm:$0xf]
  %v43 = vld [vmem:[%s1 + $0x24] sm:$0xf]
  %v44 = vld [vmem:[%s1 + $0x28] sm:$0xf]
  %v45 = vld [vmem:[%s1 + $0x2c] sm:$0xf]
  %v46 = vld [vmem:[%s1 + $0x30] sm:$0xf]
  %v47 = vld [vmem:[%s1 + $0x34] sm:$0xf]
  %v48 = vld [vmem:[%s1 + $0x38] sm:$0xf]
  %v49 = vld [vmem:[%s1 + $0x3c] sm:$0xf]
  %v66 = vunpack.c.l.b16 %v18
  %v67 = vunpack.c.l.b16 %v19
  %v68 = vunpack.c.l.b16 %v20
  %v69 = vunpack.c.l.b16 %v21
  %v70 = vunpack.c.l.b16 %v22
  %v71 = vunpack.c.l.b16 %v23
  %v72 = vunpack.c.l.b16 %v24
  %v73 = vunpack.c.l.b16 %v25
  %v74 = vunpack.c.l.b16 %v26
  %v75 = vunpack.c.l.b16 %v27
  %v76 = vunpack.c.l.b16 %v28
  %v77 = vunpack.c.l.b16 %v29
  %v78 = vunpack.c.l.b16 %v30
  %v79 = vunpack.c.l.b16 %v31
  %v80 = vunpack.c.l.b16 %v32
  %v81 = vunpack.c.l.b16 %v33
  %v82 = vpack.c.b16 %v67, %v66
  %v83 = vpack.c.b16 %v69, %v68
  %v84 = vpack.c.b16 %v71, %v70
  %v85 = vpack.c.b16 %v73, %v72
  %v86 = vpack.c.b16 %v75, %v74
  %v87 = vpack.c.b16 %v77, %v76
  %v88 = vpack.c.b16 %v79, %v78
  %v89 = vpack.c.b16 %v81, %v80
  %v114 = vunpack.c.l.b16 %v34
  %v115 = vunpack.c.l.b16 %v35
  %v116 = vunpack.c.l.b16 %v36
  %v117 = vunpack.c.l.b16 %v37
  %v118 = vunpack.c.l.b16 %v38
  %v119 = vunpack.c.l.b16 %v39
  %v120 = vunpack.c.l.b16 %v40
  %v121 = vunpack.c.l.b16 %v41
  %v122 = vunpack.c.l.b16 %v42
  %v123 = vunpack.c.l.b16 %v43
  %v124 = vunpack.c.l.b16 %v44
  %v125 = vunpack.c.l.b16 %v45
  %v126 = vunpack.c.l.b16 %v46
  %v127 = vunpack.c.l.b16 %v47
  %v128 = vunpack.c.l.b16 %v48
  %v129 = vunpack.c.l.b16 %v49
  %v130 = vpack.c.b16 %v115, %v114
  %v131 = vpack.c.b16 %v117, %v116
  %v132 = vpack.c.b16 %v119, %v118
  %v133 = vpack.c.b16 %v121, %v120
  %v134 = vpack.c.b16 %v123, %v122
  %v135 = vpack.c.b16 %v125, %v124
  %v136 = vpack.c.b16 %v127, %v126
  %v137 = vpack.c.b16 %v129, %v128
  %146 = vmatprep.subr.bf16.mxu0 0
  %147 = vmatpush1.bf16.msra.mxu0 %v130
  %148 = vmatprep.subr.bf16.mxu0 0
  %149 = vmatpush1.bf16.msra.mxu0 %v131
  %150 = vmatprep.subr.bf16.mxu0 0
  %151 = vmatpush1.bf16.msra.mxu0 %v132
  %152 = vmatprep.subr.bf16.mxu0 0
  %153 = vmatpush1.bf16.msra.mxu0 %v133
  %154 = vmatprep.subr.bf16.mxu0 0
  %155 = vmatpush1.bf16.msra.mxu0 %v134
  %156 = vmatprep.subr.bf16.mxu0 0
  %157 = vmatpush1.bf16.msra.mxu0 %v135
  %158 = vmatprep.subr.bf16.mxu0 0
  %159 = vmatpush1.bf16.msra.mxu0 %v136
  %160 = vmatprep.subr.bf16.mxu0 0
  %161 = vmatpush1.bf16.msra.mxu0 %v137
  %162 = vmatprep.subr.bf16.mxu0 0
  %163 = vmatpush1.bf16.msra.mxu0 0
  %164 = vmatprep.subr.bf16.mxu0 0
  %165 = vmatpush1.bf16.msra.mxu0 0
  %166 = vmatprep.subr.bf16.mxu0 0
  %167 = vmatpush1.bf16.msra.mxu0 0
  %168 = vmatprep.subr.bf16.mxu0 0
  %169 = vmatpush1.bf16.msra.mxu0 0
  %170 = vmatprep.subr.bf16.mxu0 0
  %171 = vmatpush1.bf16.msra.mxu0 0
  %172 = vmatprep.subr.bf16.mxu0 0
  %173 = vmatpush1.bf16.msra.mxu0 0
  %174 = vmatprep.subr.bf16.mxu0 0
  %175 = vmatpush1.bf16.msra.mxu0 0
  %176 = vmatprep.subr.bf16.mxu0 0
  %177 = vmatpush1.bf16.msra.mxu0 0
  %178 = vmatprep.mubr.bf16.mxu0 0
  %179 = vmatmul.mubr.bf16.gmra.mrb[0].mxu0 %v82
  %v180 = vpop.f32.mrb[0].mxu0
  %v181 = vadd.f32 0.0, %v180
  %v182 = vpop.f32.mrb[0].mxu0
  %v183 = vpop.f32.mrb[0].mxu0
  %v184 = vadd.f32 0.0, %v183
  %v185 = vpop.f32.mrb[0].mxu0
  %186 = vmatprep.mubr.bf16.mxu0 0
  %187 = vmatmul.mubr.bf16.gmra.mrb[0].mxu0 %v83
  %v188 = vpop.f32.mrb[0].mxu0
  %v189 = vadd.f32 0.0, %v188
  %v190 = vpop.f32.mrb[0].mxu0
  %v191 = vpop.f32.mrb[0].mxu0
  %v192 = vadd.f32 0.0, %v191
  %v193 = vpop.f32.mrb[0].mxu0
  %194 = vmatprep.mubr.bf16.mxu0 0
  %195 = vmatmul.mubr.bf16.gmra.mrb[0].mxu0 %v84
  %v196 = vpop.f32.mrb[0].mxu0
  %v197 = vadd.f32 0.0, %v196
  %v198 = vpop.f32.mrb[0].mxu0
  %v199 = vpop.f32.mrb[0].mxu0
  %v200 = vadd.f32 0.0, %v199
  %v201 = vpop.f32.mrb[0].mxu0
  %202 = vmatprep.mubr.bf16.mxu0 0
  %203 = vmatmul.mubr.bf16.gmra.mrb[0].mxu0 %v85
  %v204 = vpop.f32.mrb[0].mxu0
  %v205 = vadd.f32 0.0, %v204
  %v206 = vpop.f32.mrb[0].mxu0
  %v207 = vpop.f32.mrb[0].mxu0
  %v208 = vadd.f32 0.0, %v207
  %v209 = vpop.f32.mrb[0].mxu0
  %210 = vmatprep.mubr.bf16.mxu0 0
  %211 = vmatmul.mubr.bf16.gmra.mrb[0].mxu0 %v86
  %v212 = vpop.f32.mrb[0].mxu0
  %v213 = vadd.f32 0.0, %v212
  %v214 = vpop.f32.mrb[0].mxu0
  %v215 = vpop.f32.mrb[0].mxu0
  %v216 = vadd.f32 0.0, %v215
  %v217 = vpop.f32.mrb[0].mxu0
  %218 = vmatprep.mubr.bf16.mxu0 0
  %219 = vmatmul.mubr.bf16.gmra.mrb[0].mxu0 %v87
  %v220 = vpop.f32.mrb[0].mxu0
  %v221 = vadd.f32 0.0, %v220
  %v222 = vpop.f32.mrb[0].mxu0
  %v223 = vpop.f32.mrb[0].mxu0
  %v224 = vadd.f32 0.0, %v223
  %v225 = vpop.f32.mrb[0].mxu0
  %226 = vmatprep.mubr.bf16.mxu0 0
  %227 = vmatmul.mubr.bf16.gmra.mrb[0].mxu0 %v88
  %v228 = vpop.f32.mrb[0].mxu0
  %v229 = vadd.f32 0.0, %v228
  %v230 = vpop.f32.mrb[0].mxu0
  %v231 = vpop.f32.mrb[0].mxu0
  %v232 = vadd.f32 0.0, %v231
  %v233 = vpop.f32.mrb[0].mxu0
  %234 = vmatprep.mubr.bf16.mxu0 0
  %235 = vmatmul.mubr.bf16.gmra.mrb[0].mxu0 %v89
  %v236 = vpop.f32.mrb[0].mxu0
  %v237 = vadd.f32 0.0, %v236
  %v238 = vpop.f32.mrb[0].mxu0
  %v239 = vpop.f32.mrb[0].mxu0
  %v240 = vadd.f32 0.0, %v239
  %v241 = vpop.f32.mrb[0].mxu0
  %242 = vdwg.mxu0
  %v243 = vld [vmem:[%s2] sm:$0x1]
  %v245 = vlaneseq
  %v246 = vshrl.u32 %v245, 7
  %v247 = vsub.s32 0, %v246
  %v248 = vrot.slane %v243, %v247
  %v250 = vmul.f32 %v181, %v248
  %v251 = vmul.f32 %v184, %v248
  %v252 = vmul.f32 %v189, %v248
  %v253 = vmul.f32 %v192, %v248
  %v254 = vmul.f32 %v197, %v248
  %v255 = vmul.f32 %v200, %v248
  %v256 = vmul.f32 %v205, %v248
  %v257 = vmul.f32 %v208, %v248
  %v258 = vmul.f32 %v213, %v248
  %v259 = vmul.f32 %v216, %v248
  %v260 = vmul.f32 %v221, %v248
  %v261 = vmul.f32 %v224, %v248
  %v262 = vmul.f32 %v229, %v248
  %v263 = vmul.f32 %v232, %v248
  %v264 = vmul.f32 %v237, %v248
  %v265 = vmul.f32 %v240, %v248
  %v266 = vld [vmem:[%s3] sm:$0x1]
  %v268 = vlaneseq
  %v269 = vshrl.u32 %v268, 7
  %v270 = vsub.s32 0, %v269
  %v271 = vrot.slane %v266, %v270
  %v273 = vadd.f32 %v250, %v271
  %v274 = vadd.f32 %v251, %v271
  %v275 = vadd.f32 %v252, %v271
  %v276 = vadd.f32 %v253, %v271
  %v277 = vadd.f32 %v254, %v271
  %v278 = vadd.f32 %v255, %v271
  %v279 = vadd.f32 %v256, %v271
  %v280 = vadd.f32 %v257, %v271
  %v281 = vadd.f32 %v258, %v271
  %v282 = vadd.f32 %v259, %v271
  %v283 = vadd.f32 %v260, %v271
  %v284 = vadd.f32 %v261, %v271
  %v285 = vadd.f32 %v262, %v271
  %v286 = vadd.f32 %v263, %v271
  %v287 = vadd.f32 %v264, %v271
  %v288 = vadd.f32 %v265, %v271
  %vm289 = vcmp.gt.f32.partialorder %v273, 0.0
  %vm290 = vcmp.gt.f32.partialorder %v274, 0.0
  %vm291 = vcmp.gt.f32.partialorder %v275, 0.0
  %vm292 = vcmp.gt.f32.partialorder %v276, 0.0
  %vm293 = vcmp.gt.f32.partialorder %v277, 0.0
  %vm294 = vcmp.gt.f32.partialorder %v278, 0.0
  %vm295 = vcmp.gt.f32.partialorder %v279, 0.0
  %vm296 = vcmp.gt.f32.partialorder %v280, 0.0
  %vm297 = vcmp.gt.f32.partialorder %v281, 0.0
  %vm298 = vcmp.gt.f32.partialorder %v282, 0.0
  %vm299 = vcmp.gt.f32.partialorder %v283, 0.0
  %vm300 = vcmp.gt.f32.partialorder %v284, 0.0
  %vm301 = vcmp.gt.f32.partialorder %v285, 0.0
  %vm302 = vcmp.gt.f32.partialorder %v286, 0.0
  %vm303 = vcmp.gt.f32.partialorder %v287, 0.0
  %vm304 = vcmp.gt.f32.partialorder %v288, 0.0
  %v305 = vmul.f32 %v273, 0.05
  %v306 = vmul.f32 %v274, 0.05
  %v307 = vmul.f32 %v275, 0.05
  %v308 = vmul.f32 %v276, 0.05
  %v309 = vmul.f32 %v277, 0.05
  %v310 = vmul.f32 %v278, 0.05
  %v311 = vmul.f32 %v279, 0.05
  %v312 = vmul.f32 %v280, 0.05
  %v313 = vmul.f32 %v281, 0.05
  %v314 = vmul.f32 %v282, 0.05
  %v315 = vmul.f32 %v283, 0.05
  %v316 = vmul.f32 %v284, 0.05
  %v317 = vmul.f32 %v285, 0.05
  %v318 = vmul.f32 %v286, 0.05
  %v319 = vmul.f32 %v287, 0.05
  %v320 = vmul.f32 %v288, 0.05
  %v321 = vsel %vm289, %v273, %v305
  %v322 = vsel %vm290, %v274, %v306
  %v323 = vsel %vm291, %v275, %v307
  %v324 = vsel %vm292, %v276, %v308
  %v325 = vsel %vm293, %v277, %v309
  %v326 = vsel %vm294, %v278, %v310
  %v327 = vsel %vm295, %v279, %v311
  %v328 = vsel %vm296, %v280, %v312
  %v329 = vsel %vm297, %v281, %v313
  %v330 = vsel %vm298, %v282, %v314
  %v331 = vsel %vm299, %v283, %v315
  %v332 = vsel %vm300, %v284, %v316
  %v333 = vsel %vm301, %v285, %v317
  %v334 = vsel %vm302, %v286, %v318
  %v335 = vsel %vm303, %v287, %v319
  %v336 = vsel %vm304, %v288, %v320
  %v337 = vpack.c.bf16 %v322, %v321
  %v338 = vpack.c.bf16 %v324, %v323
  %v339 = vpack.c.bf16 %v326, %v325
  %v340 = vpack.c.bf16 %v328, %v327
  %v341 = vpack.c.bf16 %v330, %v329
  %v342 = vpack.c.bf16 %v332, %v331
  %v343 = vpack.c.bf16 %v334, %v333
  %v344 = vpack.c.bf16 %v336, %v335
  %v353 = vunpack.c.l.b16 %v337
  %v354 = vunpack.c.h.b16 %v337
  %v355 = vunpack.c.l.b16 %v338
  %v356 = vunpack.c.h.b16 %v338
  %v357 = vunpack.c.l.b16 %v339
  %v358 = vunpack.c.h.b16 %v339
  %v359 = vunpack.c.l.b16 %v340
  %v360 = vunpack.c.h.b16 %v340
  %v361 = vunpack.c.l.b16 %v341
  %v362 = vunpack.c.h.b16 %v341
  %v363 = vunpack.c.l.b16 %v342
  %v364 = vunpack.c.h.b16 %v342
  %v365 = vunpack.c.l.b16 %v343
  %v366 = vunpack.c.h.b16 %v343
  %v367 = vunpack.c.l.b16 %v344
  %v368 = vunpack.c.h.b16 %v344
  %v369 = vpack.c.b16 %v353, %v353
  %v370 = vpack.c.b16 %v354, %v354
  %v371 = vpack.c.b16 %v355, %v355
  %v372 = vpack.c.b16 %v356, %v356
  %v373 = vpack.c.b16 %v357, %v357
  %v374 = vpack.c.b16 %v358, %v358
  %v375 = vpack.c.b16 %v359, %v359
  %v376 = vpack.c.b16 %v360, %v360
  %v377 = vpack.c.b16 %v361, %v361
  %v378 = vpack.c.b16 %v362, %v362
  %v379 = vpack.c.b16 %v363, %v363
  %v380 = vpack.c.b16 %v364, %v364
  %v381 = vpack.c.b16 %v365, %v365
  %v382 = vpack.c.b16 %v366, %v366
  %v383 = vpack.c.b16 %v367, %v367
  %v384 = vpack.c.b16 %v368, %v368
  %401 = vst [vmem:[%s4] sm:$0xf] %v369
  %402 = vst [vmem:[%s4 + $0x4] sm:$0xf] %v370
  %403 = vst [vmem:[%s4 + $0x8] sm:$0xf] %v371
  %404 = vst [vmem:[%s4 + $0xc] sm:$0xf] %v372
  %405 = vst [vmem:[%s4 + $0x10] sm:$0xf] %v373
  %406 = vst [vmem:[%s4 + $0x14] sm:$0xf] %v374
  %407 = vst [vmem:[%s4 + $0x18] sm:$0xf] %v375
  %408 = vst [vmem:[%s4 + $0x1c] sm:$0xf] %v376
  %409 = vst [vmem:[%s4 + $0x20] sm:$0xf] %v377
  %410 = vst [vmem:[%s4 + $0x24] sm:$0xf] %v378
  %411 = vst [vmem:[%s4 + $0x28] sm:$0xf] %v379
  %412 = vst [vmem:[%s4 + $0x2c] sm:$0xf] %v380
  %413 = vst [vmem:[%s4 + $0x30] sm:$0xf] %v381
  %414 = vst [vmem:[%s4 + $0x34] sm:$0xf] %v382
  %415 = vst [vmem:[%s4 + $0x38] sm:$0xf] %v383
  %416 = vst [vmem:[%s4 + $0x3c] sm:$0xf] %v384
  // Predicated region
  $region18: #{gan_a_forward.12} parent=0 // pred_check
    _
  $region19: #{gan_a_forward.12} parent=0 // pred_check_branch
    %418 = sbr.rel (0) target = $region21
  $region20: #{gan_a_forward.12} parent=0 // pred_region
    _
  $region21: #{gan_a_forward.12} parent=0 // pred_fallthru
    _
  // Predicated region
  $region22: #{gan_a_forward.12} parent=0 // pred_check
    _
  $region23: #{gan_a_forward.12} parent=0 // pred_check_branch
    %420 = sbr.rel (0) target = $region25
  $region24: #{gan_a_forward.12} parent=0 // pred_region
    _
  $region25: #{gan_a_forward.12} parent=0 // pred_fallthru
    _

// kernel: gan_a_forward.11
$region0: #{gan_a_forward.11}
  #allocation0 [shape = 'u32[]', space=smem, size = 0x4, offset = 0x4, fixed_abs, tag = 'smem constant byte address 0x4 - core index']
  #allocation1 [shape = 'u32[144,128]{1,0:T(1,128)}', space=vmem, size = 0x12000, scoped, tag = 'internal scratch']
  %s0 = inlined_call_operand.vmem [shape: bf16[128,128], index: 0, kind: input, shape index: {}]
  %s1 = inlined_call_operand.vmem [shape: bf16[128,128], index: 1, kind: input, shape index: {}]
  %s2 = inlined_call_operand.vmem [shape: f32[1,128], index: 2, kind: output, shape index: {0}]
  %s3 = inlined_call_operand.vmem [shape: f32[1,128], index: 3, kind: output, shape index: {1}]
  %4 = xla_tuple %s2, %s3
  %s5 = sld [smem:[#allocation0]]
  $region30: #{gan_a_forward.11} parent=0
    _
  %s7 = ssub.s32 1, %s5
  %s8 = scalar_select 0, %s7, %s5
  // Predicated region
  $region2: #{gan_a_forward.11} parent=0 // pred_check
    _
  $region3: #{gan_a_forward.11} parent=0 // pred_check_branch
    %10 = sbr.rel (0) target = $region5
  $region4: #{gan_a_forward.11} parent=0 // pred_region
    _
  $region5: #{gan_a_forward.11} parent=0 // pred_fallthru
    _
  // Predicated region
  $region6: #{gan_a_forward.11} parent=0 // pred_check
    _
  $region7: #{gan_a_forward.11} parent=0 // pred_check_branch
    %12 = sbr.rel (0) target = $region9
  $region8: #{gan_a_forward.11} parent=0 // pred_region
    _
  $region9: #{gan_a_forward.11} parent=0 // pred_fallthru
    _
  %p14 = scmp.eq.s32.totalorder 0, 0
  // Predicated region
  $region10: #{gan_a_forward.11} parent=0 // pred_check
    %p15 = pneg %p14
  $region11: #{gan_a_forward.11} parent=0 // pred_check_branch
    %17 = sbr.rel (%p15) target = $region13
  $region12: #{gan_a_forward.11} parent=0 // pred_region
    %18 = vst [vmem:[%s2] sm:$0x1] 0.0
    %19 = vst [vmem:[%s3] sm:$0x1] 0.0
  $region13: #{gan_a_forward.11} parent=0 // pred_fallthru
    _
  %v20 = vld [vmem:[%s0] sm:$0xf]
  %v21 = vld [vmem:[%s0 + $0x4] sm:$0xf]
  %v22 = vld [vmem:[%s0 + $0x8] sm:$0xf]
  %v23 = vld [vmem:[%s0 + $0xc] sm:$0xf]
  %v24 = vld [vmem:[%s0 + $0x10] sm:$0xf]
  %v25 = vld [vmem:[%s0 + $0x14] sm:$0xf]
  %v26 = vld [vmem:[%s0 + $0x18] sm:$0xf]
  %v27 = vld [vmem:[%s0 + $0x1c] sm:$0xf]
  %v28 = vld [vmem:[%s0 + $0x20] sm:$0xf]
  %v29 = vld [vmem:[%s0 + $0x24] sm:$0xf]
  %v30 = vld [vmem:[%s0 + $0x28] sm:$0xf]
  %v31 = vld [vmem:[%s0 + $0x2c] sm:$0xf]
  %v32 = vld [vmem:[%s0 + $0x30] sm:$0xf]
  %v33 = vld [vmem:[%s0 + $0x34] sm:$0xf]
  %v34 = vld [vmem:[%s0 + $0x38] sm:$0xf]
  %v35 = vld [vmem:[%s0 + $0x3c] sm:$0xf]
  %v36 = vld [vmem:[%s1] sm:$0xf]
  %v37 = vld [vmem:[%s1 + $0x4] sm:$0xf]
  %v38 = vld [vmem:[%s1 + $0x8] sm:$0xf]
  %v39 = vld [vmem:[%s1 + $0xc] sm:$0xf]
  %v40 = vld [vmem:[%s1 + $0x10] sm:$0xf]
  %v41 = vld [vmem:[%s1 + $0x14] sm:$0xf]
  %v42 = vld [vmem:[%s1 + $0x18] sm:$0xf]
  %v43 = vld [vmem:[%s1 + $0x1c] sm:$0xf]
  %v44 = vld [vmem:[%s1 + $0x20] sm:$0xf]
  %v45 = vld [vmem:[%s1 + $0x24] sm:$0xf]
  %v46 = vld [vmem:[%s1 + $0x28] sm:$0xf]
  %v47 = vld [vmem:[%s1 + $0x2c] sm:$0xf]
  %v48 = vld [vmem:[%s1 + $0x30] sm:$0xf]
  %v49 = vld [vmem:[%s1 + $0x34] sm:$0xf]
  %v50 = vld [vmem:[%s1 + $0x38] sm:$0xf]
  %v51 = vld [vmem:[%s1 + $0x3c] sm:$0xf]
  %v68 = vunpack.c.l.b16 %v20
  %v69 = vunpack.c.l.b16 %v21
  %v70 = vunpack.c.l.b16 %v22
  %v71 = vunpack.c.l.b16 %v23
  %v72 = vunpack.c.l.b16 %v24
  %v73 = vunpack.c.l.b16 %v25
  %v74 = vunpack.c.l.b16 %v26
  %v75 = vunpack.c.l.b16 %v27
  %v76 = vunpack.c.l.b16 %v28
  %v77 = vunpack.c.l.b16 %v29
  %v78 = vunpack.c.l.b16 %v30
  %v79 = vunpack.c.l.b16 %v31
  %v80 = vunpack.c.l.b16 %v32
  %v81 = vunpack.c.l.b16 %v33
  %v82 = vunpack.c.l.b16 %v34
  %v83 = vunpack.c.l.b16 %v35
  %v84 = vpack.c.b16 %v69, %v68
  %v85 = vpack.c.b16 %v71, %v70
  %v86 = vpack.c.b16 %v73, %v72
  %v87 = vpack.c.b16 %v75, %v74
  %v88 = vpack.c.b16 %v77, %v76
  %v89 = vpack.c.b16 %v79, %v78
  %v90 = vpack.c.b16 %v81, %v80
  %v91 = vpack.c.b16 %v83, %v82
  %v116 = vunpack.c.l.b16 %v36
  %v117 = vunpack.c.l.b16 %v37
  %v118 = vunpack.c.l.b16 %v38
  %v119 = vunpack.c.l.b16 %v39
  %v120 = vunpack.c.l.b16 %v40
  %v121 = vunpack.c.l.b16 %v41
  %v122 = vunpack.c.l.b16 %v42
  %v123 = vunpack.c.l.b16 %v43
  %v124 = vunpack.c.l.b16 %v44
  %v125 = vunpack.c.l.b16 %v45
  %v126 = vunpack.c.l.b16 %v46
  %v127 = vunpack.c.l.b16 %v47
  %v128 = vunpack.c.l.b16 %v48
  %v129 = vunpack.c.l.b16 %v49
  %v130 = vunpack.c.l.b16 %v50
  %v131 = vunpack.c.l.b16 %v51
  %v132 = vpack.c.b16 %v117, %v116
  %v133 = vpack.c.b16 %v119, %v118
  %v134 = vpack.c.b16 %v121, %v120
  %v135 = vpack.c.b16 %v123, %v122
  %v136 = vpack.c.b16 %v125, %v124
  %v137 = vpack.c.b16 %v127, %v126
  %v138 = vpack.c.b16 %v129, %v128
  %v139 = vpack.c.b16 %v131, %v130
  %148 = vmatprep.subr.bf16.mxu0 0
  %149 = vmatpush1.bf16.msra.mxu0 %v132
  %150 = vmatprep.subr.bf16.mxu0 0
  %151 = vmatpush1.bf16.msra.mxu0 %v133
  %152 = vmatprep.subr.bf16.mxu0 0
  %153 = vmatpush1.bf16.msra.mxu0 %v134
  %154 = vmatprep.subr.bf16.mxu0 0
  %155 = vmatpush1.bf16.msra.mxu0 %v135
  %156 = vmatprep.subr.bf16.mxu0 0
  %157 = vmatpush1.bf16.msra.mxu0 %v136
  %158 = vmatprep.subr.bf16.mxu0 0
  %159 = vmatpush1.bf16.msra.mxu0 %v137
  %160 = vmatprep.subr.bf16.mxu0 0
  %161 = vmatpush1.bf16.msra.mxu0 %v138
  %162 = vmatprep.subr.bf16.mxu0 0
  %163 = vmatpush1.bf16.msra.mxu0 %v139
  %164 = vmatprep.subr.bf16.mxu0 0
  %165 = vmatpush1.bf16.msra.mxu0 0
  %166 = vmatprep.subr.bf16.mxu0 0
  %167 = vmatpush1.bf16.msra.mxu0 0
  %168 = vmatprep.subr.bf16.mxu0 0
  %169 = vmatpush1.bf16.msra.mxu0 0
  %170 = vmatprep.subr.bf16.mxu0 0
  %171 = vmatpush1.bf16.msra.mxu0 0
  %172 = vmatprep.subr.bf16.mxu0 0
  %173 = vmatpush1.bf16.msra.mxu0 0
  %174 = vmatprep.subr.bf16.mxu0 0
  %175 = vmatpush1.bf16.msra.mxu0 0
  %176 = vmatprep.subr.bf16.mxu0 0
  %177 = vmatpush1.bf16.msra.mxu0 0
  %178 = vmatprep.subr.bf16.mxu0 0
  %179 = vmatpush1.bf16.msra.mxu0 0
  %180 = vmatprep.mubr.bf16.mxu0 0
  %181 = vmatmul.mubr.bf16.gmra.mrb[0].mxu0 %v84
  %v182 = vpop.f32.mrb[0].mxu0
  %v183 = vadd.f32 0.0, %v182
  %v184 = vpop.f32.mrb[0].mxu0
  %v185 = vpop.f32.mrb[0].mxu0
  %v186 = vadd.f32 0.0, %v185
  %v187 = vpop.f32.mrb[0].mxu0
  %188 = vmatprep.mubr.bf16.mxu0 0
  %189 = vmatmul.mubr.bf16.gmra.mrb[0].mxu0 %v85
  %v190 = vpop.f32.mrb[0].mxu0
  %v191 = vadd.f32 0.0, %v190
  %v192 = vpop.f32.mrb[0].mxu0
  %v193 = vpop.f32.mrb[0].mxu0
  %v194 = vadd.f32 0.0, %v193
  %v195 = vpop.f32.mrb[0].mxu0
  %196 = vmatprep.mubr.bf16.mxu0 0
  %197 = vmatmul.mubr.bf16.gmra.mrb[0].mxu0 %v86
  %v198 = vpop.f32.mrb[0].mxu0
  %v199 = vadd.f32 0.0, %v198
  %v200 = vpop.f32.mrb[0].mxu0
  %v201 = vpop.f32.mrb[0].mxu0
  %v202 = vadd.f32 0.0, %v201
  %v203 = vpop.f32.mrb[0].mxu0
  %204 = vmatprep.mubr.bf16.mxu0 0
  %205 = vmatmul.mubr.bf16.gmra.mrb[0].mxu0 %v87
  %v206 = vpop.f32.mrb[0].mxu0
  %v207 = vadd.f32 0.0, %v206
  %v208 = vpop.f32.mrb[0].mxu0
  %v209 = vpop.f32.mrb[0].mxu0
  %v210 = vadd.f32 0.0, %v209
  %v211 = vpop.f32.mrb[0].mxu0
  %212 = vmatprep.mubr.bf16.mxu0 0
  %213 = vmatmul.mubr.bf16.gmra.mrb[0].mxu0 %v88
  %v214 = vpop.f32.mrb[0].mxu0
  %v215 = vadd.f32 0.0, %v214
  %v216 = vpop.f32.mrb[0].mxu0
  %v217 = vpop.f32.mrb[0].mxu0
  %v218 = vadd.f32 0.0, %v217
  %v219 = vpop.f32.mrb[0].mxu0
  %220 = vmatprep.mubr.bf16.mxu0 0
  %221 = vmatmul.mubr.bf16.gmra.mrb[0].mxu0 %v89
  %v222 = vpop.f32.mrb[0].mxu0
  %v223 = vadd.f32 0.0, %v222
  %v224 = vpop.f32.mrb[0].mxu0
  %v225 = vpop.f32.mrb[0].mxu0
  %v226 = vadd.f32 0.0, %v225
  %v227 = vpop.f32.mrb[0].mxu0
  %228 = vmatprep.mubr.bf16.mxu0 0
  %229 = vmatmul.mubr.bf16.gmra.mrb[0].mxu0 %v90
  %v230 = vpop.f32.mrb[0].mxu0
  %v231 = vadd.f32 0.0, %v230
  %v232 = vpop.f32.mrb[0].mxu0
  %v233 = vpop.f32.mrb[0].mxu0
  %v234 = vadd.f32 0.0, %v233
  %v235 = vpop.f32.mrb[0].mxu0
  %236 = vmatprep.mubr.bf16.mxu0 0
  %237 = vmatmul.mubr.bf16.gmra.mrb[0].mxu0 %v91
  %v238 = vpop.f32.mrb[0].mxu0
  %v239 = vadd.f32 0.0, %v238
  %v240 = vpop.f32.mrb[0].mxu0
  %v241 = vpop.f32.mrb[0].mxu0
  %v242 = vadd.f32 0.0, %v241
  %v243 = vpop.f32.mrb[0].mxu0
  %244 = vdwg.mxu0
  %v245 = vld [vmem:[%s2] sm:$0x1]
  %v246 = vadd.f32 %v183, %v186
  %v247 = vadd.f32 %v246, %v191
  %v248 = vadd.f32 %v247, %v194
  %v249 = vadd.f32 %v248, %v199
  %v250 = vadd.f32 %v249, %v202
  %v251 = vadd.f32 %v250, %v207
  %v252 = vadd.f32 %v251, %v210
  %v253 = vadd.f32 %v252, %v215
  %v254 = vadd.f32 %v253, %v218
  %v255 = vadd.f32 %v254, %v223
  %v256 = vadd.f32 %v255, %v226
  %v257 = vadd.f32 %v256, %v231
  %v258 = vadd.f32 %v257, %v234
  %v259 = vadd.f32 %v258, %v239
  %v260 = vadd.f32 %v259, %v242
  %v261 = vrot.slane %v260, 4
  %v262 = vadd.f32 %v260, %v261
  %v263 = vrot.slane %v262, 2
  %v264 = vadd.f32 %v262, %v263
  %v265 = vrot.slane %v264, 1
  %v266 = vadd.f32 %v264, %v265
  %v267 = vadd.f32 %v245, %v266
  %268 = vst [vmem:[%s2] sm:$0x1] %v267
  %v269 = vld [vmem:[%s3] sm:$0x1]
  %v270 = vmul.f32 %v183, %v183
  %v271 = vmul.f32 %v186, %v186
  %v272 = vmul.f32 %v191, %v191
  %v273 = vmul.f32 %v194, %v194
  %v274 = vmul.f32 %v199, %v199
  %v275 = vmul.f32 %v202, %v202
  %v276 = vmul.f32 %v207, %v207
  %v277 = vmul.f32 %v210, %v210
  %v278 = vmul.f32 %v215, %v215
  %v279 = vmul.f32 %v218, %v218
  %v280 = vmul.f32 %v223, %v223
  %v281 = vmul.f32 %v226, %v226
  %v282 = vmul.f32 %v231, %v231
  %v283 = vmul.f32 %v234, %v234
  %v284 = vmul.f32 %v239, %v239
  %v285 = vmul.f32 %v242, %v242
  %v286 = vadd.f32 %v270, %v271
  %v287 = vadd.f32 %v286, %v272
  %v288 = vadd.f32 %v287, %v273
  %v289 = vadd.f32 %v288, %v274
  %v290 = vadd.f32 %v289, %v275
  %v291 = vadd.f32 %v290, %v276
  %v292 = vadd.f32 %v291, %v277
  %v293 = vadd.f32 %v292, %v278
  %v294 = vadd.f32 %v293, %v279
  %v295 = vadd.f32 %v294, %v280
  %v296 = vadd.f32 %v295, %v281
  %v297 = vadd.f32 %v296, %v282
  %v298 = vadd.f32 %v297, %v283
  %v299 = vadd.f32 %v298, %v284
  %v300 = vadd.f32 %v299, %v285
  %v301 = vrot.slane %v300, 4
  %v302 = vadd.f32 %v300, %v301
  %v303 = vrot.slane %v302, 2
  %v304 = vadd.f32 %v302, %v303
  %v305 = vrot.slane %v304, 1
  %v306 = vadd.f32 %v304, %v305
  %v307 = vadd.f32 %v269, %v306
  %308 = vst [vmem:[%s3] sm:$0x1] %v307
  // Predicated region
  $region14: #{gan_a_forward.11} parent=0 // pred_check
    _
  $region15: #{gan_a_forward.11} parent=0 // pred_check_branch
    %310 = sbr.rel (0) target = $region17
  $region16: #{gan_a_forward.11} parent=0 // pred_region
    _
  $region17: #{gan_a_forward.11} parent=0 // pred_fallthru
    _
  // Predicated region
  $region18: #{gan_a_forward.11} parent=0 // pred_check
    _
  $region19: #{gan_a_forward.11} parent=0 // pred_check_branch
    %312 = sbr.rel (0) target = $region21
  $region20: #{gan_a_forward.11} parent=0 // pred_region
    _
  $region21: #{gan_a_forward.11} parent=0 // pred_fallthru
    _
  // Predicated region
  $region22: #{gan_a_forward.11} parent=0 // pred_check
    _
  $region23: #{gan_a_forward.11} parent=0 // pred_check_branch
    %314 = sbr.rel (0) target = $region25
  $region24: #{gan_a_forward.11} parent=0 // pred_region
    _
  $region25: #{gan_a_forward.11} parent=0 // pred_fallthru
    _
  // Predicated region
  $region26: #{gan_a_forward.11} parent=0 // pred_check
    _
  $region27: #{gan_a_forward.11} parent=0 // pred_check_branch
    %316 = sbr.rel (0) target = $region29
  $region28: #{gan_a_forward.11} parent=0 // pred_region
    _
  $region29: #{gan_a_forward.11} parent=0 // pred_fallthru
    _

// kernel: gan_a_forward.13
$region0: #{gan_a_forward.13}
  #allocation0 [shape = 'u32[]', space=smem, size = 0x4, offset = 0x4, fixed_abs, tag = 'smem constant byte address 0x4 - core index']
  #allocation1 [shape = 'u32[144,128]{1,0:T(1,128)}', space=vmem, size = 0x12000, scoped, tag = 'internal scratch']
  %s0 = inlined_call_operand.vmem [shape: bf16[32,256], index: 0, kind: input, shape index: {}]
  %s1 = inlined_call_operand.vmem [shape: bf16[256,128], index: 1, kind: input, shape index: {}]
  %s2 = inlined_call_operand.vmem [shape: f32[1,128], index: 2, kind: output, shape index: {0}]
  %s3 = inlined_call_operand.vmem [shape: f32[1,128], index: 3, kind: output, shape index: {1}]
  %4 = xla_tuple %s2, %s3
  %s5 = sld [smem:[#allocation0]]
  $region30: #{gan_a_forward.13} parent=0
    _
  %s7 = ssub.s32 1, %s5
  %s8 = scalar_select 0, %s7, %s5
  // Predicated region
  $region2: #{gan_a_forward.13} parent=0 // pred_check
    _
  $region3: #{gan_a_forward.13} parent=0 // pred_check_branch
    %10 = sbr.rel (0) target = $region5
  $region4: #{gan_a_forward.13} parent=0 // pred_region
    _
  $region5: #{gan_a_forward.13} parent=0 // pred_fallthru
    _
  // Predicated region
  $region6: #{gan_a_forward.13} parent=0 // pred_check
    _
  $region7: #{gan_a_forward.13} parent=0 // pred_check_branch
    %12 = sbr.rel (0) target = $region9
  $region8: #{gan_a_forward.13} parent=0 // pred_region
    _
  $region9: #{gan_a_forward.13} parent=0 // pred_fallthru
    _
  %p14 = scmp.eq.s32.totalorder 0, 0
  // Predicated region
  $region10: #{gan_a_forward.13} parent=0 // pred_check
    %p15 = pneg %p14
  $region11: #{gan_a_forward.13} parent=0 // pred_check_branch
    %17 = sbr.rel (%p15) target = $region13
  $region12: #{gan_a_forward.13} parent=0 // pred_region
    %18 = vst [vmem:[%s2] sm:$0x1] 0.0
    %19 = vst [vmem:[%s3] sm:$0x1] 0.0
  $region13: #{gan_a_forward.13} parent=0 // pred_fallthru
    _
  %v20 = vld [vmem:[%s0] sm:$0xff]
  %v21 = vld [vmem:[%s0 + $0x8] sm:$0xff]
  %v22 = vld [vmem:[%s0 + $0x10] sm:$0xff]
  %v23 = vld [vmem:[%s0 + $0x18] sm:$0xff]
  %v24 = vld [vmem:[%s1] sm:$0xf]
  %v25 = vld [vmem:[%s1 + $0x4] sm:$0xf]
  %v26 = vld [vmem:[%s1 + $0x8] sm:$0xf]
  %v27 = vld [vmem:[%s1 + $0xc] sm:$0xf]
  %v28 = vld [vmem:[%s1 + $0x10] sm:$0xf]
  %v29 = vld [vmem:[%s1 + $0x14] sm:$0xf]
  %v30 = vld [vmem:[%s1 + $0x18] sm:$0xf]
  %v31 = vld [vmem:[%s1 + $0x1c] sm:$0xf]
  %v32 = vld [vmem:[%s1 + $0x20] sm:$0xf]
  %v33 = vld [vmem:[%s1 + $0x24] sm:$0xf]
  %v34 = vld [vmem:[%s1 + $0x28] sm:$0xf]
  %v35 = vld [vmem:[%s1 + $0x2c] sm:$0xf]
  %v36 = vld [vmem:[%s1 + $0x30] sm:$0xf]
  %v37 = vld [vmem:[%s1 + $0x34] sm:$0xf]
  %v38 = vld [vmem:[%s1 + $0x38] sm:$0xf]
  %v39 = vld [vmem:[%s1 + $0x3c] sm:$0xf]
  %v40 = vld [vmem:[%s1 + $0x40] sm:$0xf]
  %v41 = vld [vmem:[%s1 + $0x44] sm:$0xf]
  %v42 = vld [vmem:[%s1 + $0x48] sm:$0xf]
  %v43 = vld [vmem:[%s1 + $0x4c] sm:$0xf]
  %v44 = vld [vmem:[%s1 + $0x50] sm:$0xf]
  %v45 = vld [vmem:[%s1 + $0x54] sm:$0xf]
  %v46 = vld [vmem:[%s1 + $0x58] sm:$0xf]
  %v47 = vld [vmem:[%s1 + $0x5c] sm:$0xf]
  %v48 = vld [vmem:[%s1 + $0x60] sm:$0xf]
  %v49 = vld [vmem:[%s1 + $0x64] sm:$0xf]
  %v50 = vld [vmem:[%s1 + $0x68] sm:$0xf]
  %v51 = vld [vmem:[%s1 + $0x6c] sm:$0xf]
  %v52 = vld [vmem:[%s1 + $0x70] sm:$0xf]
  %v53 = vld [vmem:[%s1 + $0x74] sm:$0xf]
  %v54 = vld [vmem:[%s1 + $0x78] sm:$0xf]
  %v55 = vld [vmem:[%s1 + $0x7c] sm:$0xf]
  %v60 = vunpack.c.l.b16 %v20
  %v61 = vunpack.c.h.b16 %v20
  %v62 = vunpack.c.l.b16 %v21
  %v63 = vunpack.c.h.b16 %v21
  %v64 = vunpack.c.l.b16 %v22
  %v65 = vunpack.c.h.b16 %v22
  %v66 = vunpack.c.l.b16 %v23
  %v67 = vunpack.c.h.b16 %v23
  %v68 = vpack.c.b16 %v62, %v60
  %v69 = vpack.c.b16 %v63, %v61
  %v70 = vpack.c.b16 %v66, %v64
  %v71 = vpack.c.b16 %v67, %v65
  %v108 = vunpack.c.l.b16 %v24
  %v109 = vunpack.c.l.b16 %v25
  %v110 = vunpack.c.l.b16 %v26
  %v111 = vunpack.c.l.b16 %v27
  %v112 = vunpack.c.l.b16 %v28
  %v113 = vunpack.c.l.b16 %v29
  %v114 = vunpack.c.l.b16 %v30
  %v115 = vunpack.c.l.b16 %v31
  %v116 = vunpack.c.l.b16 %v32
  %v117 = vunpack.c.l.b16 %v33
  %v118 = vunpack.c.l.b16 %v34
  %v119 = vunpack.c.l.b16 %v35
  %v120 = vunpack.c.l.b16 %v36
  %v121 = vunpack.c.l.b16 %v37
  %v122 = vunpack.c.l.b16 %v38
  %v123 = vunpack.c.l.b16 %v39
  %v124 = vunpack.c.l.b16 %v40
  %v125 = vunpack.c.l.b16 %v41
  %v126 = vunpack.c.l.b16 %v42
  %v127 = vunpack.c.l.b16 %v43
  %v128 = vunpack.c.l.b16 %v44
  %v129 = vunpack.c.l.b16 %v45
  %v130 = vunpack.c.l.b16 %v46
  %v131 = vunpack.c.l.b16 %v47
  %v132 = vunpack.c.l.b16 %v48
  %v133 = vunpack.c.l.b16 %v49
  %v134 = vunpack.c.l.b16 %v50
  %v135 = vunpack.c.l.b16 %v51
  %v136 = vunpack.c.l.b16 %v52
  %v137 = vunpack.c.l.b16 %v53
  %v138 = vunpack.c.l.b16 %v54
  %v139 = vunpack.c.l.b16 %v55
  %v140 = vpack.c.b16 %v109, %v108
  %v141 = vpack.c.b16 %v111, %v110
  %v142 = vpack.c.b16 %v113, %v112
  %v143 = vpack.c.b16 %v115, %v114
  %v144 = vpack.c.b16 %v117, %v116
  %v145 = vpack.c.b16 %v119, %v118
  %v146 = vpack.c.b16 %v121, %v120
  %v147 = vpack.c.b16 %v123, %v122
  %v148 = vpack.c.b16 %v125, %v124
  %v149 = vpack.c.b16 %v127, %v126
  %v150 = vpack.c.b16 %v129, %v128
  %v151 = vpack.c.b16 %v131, %v130
  %v152 = vpack.c.b16 %v133, %v132
  %v153 = vpack.c.b16 %v135, %v134
  %v154 = vpack.c.b16 %v137, %v136
  %v155 = vpack.c.b16 %v139, %v138
  %172 = vmatprep.subr.bf16.mxu0 0
  %173 = vmatpush1.bf16.msra.mxu0 %v140
  %174 = vmatprep.subr.bf16.mxu0 0
  %175 = vmatpush1.bf16.msra.mxu0 %v141
  %176 = vmatprep.subr.bf16.mxu0 0
  %177 = vmatpush1.bf16.msra.mxu0 %v142
  %178 = vmatprep.subr.bf16.mxu0 0
  %179 = vmatpush1.bf16.msra.mxu0 %v143
  %180 = vmatprep.subr.bf16.mxu0 0
  %181 = vmatpush1.bf16.msra.mxu0 %v144
  %182 = vmatprep.subr.bf16.mxu0 0
  %183 = vmatpush1.bf16.msra.mxu0 %v145
  %184 = vmatprep.subr.bf16.mxu0 0
  %185 = vmatpush1.bf16.msra.mxu0 %v146
  %186 = vmatprep.subr.bf16.mxu0 0
  %187 = vmatpush1.bf16.msra.mxu0 %v147
  %188 = vmatprep.subr.bf16.mxu0 0
  %189 = vmatpush1.bf16.msra.mxu0 %v148
  %190 = vmatprep.subr.bf16.mxu0 0
  %191 = vmatpush1.bf16.msra.mxu0 %v149
  %192 = vmatprep.subr.bf16.mxu0 0
  %193 = vmatpush1.bf16.msra.mxu0 %v150
  %194 = vmatprep.subr.bf16.mxu0 0
  %195 = vmatpush1.bf16.msra.mxu0 %v151
  %196 = vmatprep.subr.bf16.mxu0 0
  %197 = vmatpush1.bf16.msra.mxu0 %v152
  %198 = vmatprep.subr.bf16.mxu0 0
  %199 = vmatpush1.bf16.msra.mxu0 %v153
  %200 = vmatprep.subr.bf16.mxu0 0
  %201 = vmatpush1.bf16.msra.mxu0 %v154
  %202 = vmatprep.subr.bf16.mxu0 0
  %203 = vmatpush1.bf16.msra.mxu0 %v155
  %204 = vmatprep.mubr.bf16.mxu0 %v69
  %205 = vmatmul.mubr.bf16.gmra.mrb[0].mxu0 %v68
  %v206 = vpop.f32.mrb[0].mxu0
  %v207 = vadd.f32 0.0, %v206
  %v208 = vpop.f32.mrb[0].mxu0
  %v209 = vpop.f32.mrb[0].mxu0
  %v210 = vadd.f32 0.0, %v209
  %v211 = vpop.f32.mrb[0].mxu0
  %212 = vmatprep.mubr.bf16.mxu0 %v71
  %213 = vmatmul.mubr.bf16.gmra.mrb[0].mxu0 %v70
  %v214 = vpop.f32.mrb[0].mxu0
  %v215 = vadd.f32 0.0, %v214
  %v216 = vpop.f32.mrb[0].mxu0
  %v217 = vpop.f32.mrb[0].mxu0
  %v218 = vadd.f32 0.0, %v217
  %v219 = vpop.f32.mrb[0].mxu0
  %220 = vdwg.mxu0
  %v221 = vld [vmem:[%s2] sm:$0x1]
  %v222 = vadd.f32 %v207, %v210
  %v223 = vadd.f32 %v222, %v215
  %v224 = vadd.f32 %v223, %v218
  %v225 = vrot.slane %v224, 4
  %v226 = vadd.f32 %v224, %v225
  %v227 = vrot.slane %v226, 2
  %v228 = vadd.f32 %v226, %v227
  %v229 = vrot.slane %v228, 1
  %v230 = vadd.f32 %v228, %v229
  %v231 = vadd.f32 %v221, %v230
  %232 = vst [vmem:[%s2] sm:$0x1] %v231
  %v233 = vld [vmem:[%s3] sm:$0x1]
  %v234 = vmul.f32 %v207, %v207
  %v235 = vmul.f32 %v210, %v210
  %v236 = vmul.f32 %v215, %v215
  %v237 = vmul.f32 %v218, %v218
  %v238 = vadd.f32 %v234, %v235
  %v239 = vadd.f32 %v238, %v236
  %v240 = vadd.f32 %v239, %v237
  %v241 = vrot.slane %v240, 4
  %v242 = vadd.f32 %v240, %v241
  %v243 = vrot.slane %v242, 2
  %v244 = vadd.f32 %v242, %v243
  %v245 = vrot.slane %v244, 1
  %v246 = vadd.f32 %v244, %v245
  %v247 = vadd.f32 %v233, %v246
  %248 = vst [vmem:[%s3] sm:$0x1] %v247
  // Predicated region
  $region14: #{gan_a_forward.13} parent=0 // pred_check
    _
  $region15: #{gan_a_forward.13} parent=0 // pred_check_branch
    %250 = sbr.rel (0) target = $region17
  $region16: #{gan_a_forward.13} parent=0 // pred_region
    _
  $region17: #{gan_a_forward.13} parent=0 // pred_fallthru
    _
  // Predicated region
  $region18: #{gan_a_forward.13} parent=0 // pred_check
    _
  $region19: #{gan_a_forward.13} parent=0 // pred_check_branch
    %252 = sbr.rel (0) target = $region21
  $region20: #{gan_a_forward.13} parent=0 // pred_region
    _
  $region21: #{gan_a_forward.13} parent=0 // pred_fallthru
    _
  // Predicated region
  $region22: #{gan_a_forward.13} parent=0 // pred_check
    _
  $region23: #{gan_a_forward.13} parent=0 // pred_check_branch
    %254 = sbr.rel (0) target = $region25
  $region24: #{gan_a_forward.13} parent=0 // pred_region
    _
  $region25: #{gan_a_forward.13} parent=0 // pred_fallthru
    _
  // Predicated region
  $region26: #{gan_a_forward.13} parent=0 // pred_check
    _
  $region27: #{gan_a_forward.13} parent=0 // pred_check_branch
    %256 = sbr.rel (0) target = $region29
  $region28: #{gan_a_forward.13} parent=0 // pred_region
    _
  $region29: #{gan_a_forward.13} parent=0 // pred_fallthru
    _

// kernel: gan_a_forward.14
$region0: #{gan_a_forward.14}
  #allocation0 [shape = 'u32[]', space=smem, size = 0x4, offset = 0x4, fixed_abs, tag = 'smem constant byte address 0x4 - core index']
  #allocation1 [shape = 'u32[144,128]{1,0:T(1,128)}', space=vmem, size = 0x12000, scoped, tag = 'internal scratch']
  %s0 = inlined_call_operand.vmem [shape: bf16[32,256], index: 0, kind: input, shape index: {}]
  %s1 = inlined_call_operand.vmem [shape: bf16[256,128], index: 1, kind: input, shape index: {}]
  %s2 = inlined_call_operand.vmem [shape: f32[1,128], index: 2, kind: input, shape index: {}]
  %s3 = inlined_call_operand.vmem [shape: f32[1,128], index: 3, kind: input, shape index: {}]
  %s4 = inlined_call_operand.vmem [shape: bf16[32,128], index: 4, kind: output, shape index: {}]
  %s5 = sld [smem:[#allocation0]]
  $region26: #{gan_a_forward.14} parent=0
    _
  %s7 = ssub.s32 1, %s5
  %s8 = scalar_select 0, %s7, %s5
  // Predicated region
  $region2: #{gan_a_forward.14} parent=0 // pred_check
    _
  $region3: #{gan_a_forward.14} parent=0 // pred_check_branch
    %10 = sbr.rel (0) target = $region5
  $region4: #{gan_a_forward.14} parent=0 // pred_region
    _
  $region5: #{gan_a_forward.14} parent=0 // pred_fallthru
    _
  // Predicated region
  $region6: #{gan_a_forward.14} parent=0 // pred_check
    _
  $region7: #{gan_a_forward.14} parent=0 // pred_check_branch
    %12 = sbr.rel (0) target = $region9
  $region8: #{gan_a_forward.14} parent=0 // pred_region
    _
  $region9: #{gan_a_forward.14} parent=0 // pred_fallthru
    _
  // Predicated region
  $region10: #{gan_a_forward.14} parent=0 // pred_check
    _
  $region11: #{gan_a_forward.14} parent=0 // pred_check_branch
    %14 = sbr.rel (0) target = $region13
  $region12: #{gan_a_forward.14} parent=0 // pred_region
    _
  $region13: #{gan_a_forward.14} parent=0 // pred_fallthru
    _
  // Predicated region
  $region14: #{gan_a_forward.14} parent=0 // pred_check
    _
  $region15: #{gan_a_forward.14} parent=0 // pred_check_branch
    %16 = sbr.rel (0) target = $region17
  $region16: #{gan_a_forward.14} parent=0 // pred_region
    _
  $region17: #{gan_a_forward.14} parent=0 // pred_fallthru
    _
  %v18 = vld [vmem:[%s0] sm:$0xff]
  %v19 = vld [vmem:[%s0 + $0x8] sm:$0xff]
  %v20 = vld [vmem:[%s0 + $0x10] sm:$0xff]
  %v21 = vld [vmem:[%s0 + $0x18] sm:$0xff]
  %v22 = vld [vmem:[%s1] sm:$0xf]
  %v23 = vld [vmem:[%s1 + $0x4] sm:$0xf]
  %v24 = vld [vmem:[%s1 + $0x8] sm:$0xf]
  %v25 = vld [vmem:[%s1 + $0xc] sm:$0xf]
  %v26 = vld [vmem:[%s1 + $0x10] sm:$0xf]
  %v27 = vld [vmem:[%s1 + $0x14] sm:$0xf]
  %v28 = vld [vmem:[%s1 + $0x18] sm:$0xf]
  %v29 = vld [vmem:[%s1 + $0x1c] sm:$0xf]
  %v30 = vld [vmem:[%s1 + $0x20] sm:$0xf]
  %v31 = vld [vmem:[%s1 + $0x24] sm:$0xf]
  %v32 = vld [vmem:[%s1 + $0x28] sm:$0xf]
  %v33 = vld [vmem:[%s1 + $0x2c] sm:$0xf]
  %v34 = vld [vmem:[%s1 + $0x30] sm:$0xf]
  %v35 = vld [vmem:[%s1 + $0x34] sm:$0xf]
  %v36 = vld [vmem:[%s1 + $0x38] sm:$0xf]
  %v37 = vld [vmem:[%s1 + $0x3c] sm:$0xf]
  %v38 = vld [vmem:[%s1 + $0x40] sm:$0xf]
  %v39 = vld [vmem:[%s1 + $0x44] sm:$0xf]
  %v40 = vld [vmem:[%s1 + $0x48] sm:$0xf]
  %v41 = vld [vmem:[%s1 + $0x4c] sm:$0xf]
  %v42 = vld [vmem:[%s1 + $0x50] sm:$0xf]
  %v43 = vld [vmem:[%s1 + $0x54] sm:$0xf]
  %v44 = vld [vmem:[%s1 + $0x58] sm:$0xf]
  %v45 = vld [vmem:[%s1 + $0x5c] sm:$0xf]
  %v46 = vld [vmem:[%s1 + $0x60] sm:$0xf]
  %v47 = vld [vmem:[%s1 + $0x64] sm:$0xf]
  %v48 = vld [vmem:[%s1 + $0x68] sm:$0xf]
  %v49 = vld [vmem:[%s1 + $0x6c] sm:$0xf]
  %v50 = vld [vmem:[%s1 + $0x70] sm:$0xf]
  %v51 = vld [vmem:[%s1 + $0x74] sm:$0xf]
  %v52 = vld [vmem:[%s1 + $0x78] sm:$0xf]
  %v53 = vld [vmem:[%s1 + $0x7c] sm:$0xf]
  %v58 = vunpack.c.l.b16 %v18
  %v59 = vunpack.c.h.b16 %v18
  %v60 = vunpack.c.l.b16 %v19
  %v61 = vunpack.c.h.b16 %v19
  %v62 = vunpack.c.l.b16 %v20
  %v63 = vunpack.c.h.b16 %v20
  %v64 = vunpack.c.l.b16 %v21
  %v65 = vunpack.c.h.b16 %v21
  %v66 = vpack.c.b16 %v60, %v58
  %v67 = vpack.c.b16 %v61, %v59
  %v68 = vpack.c.b16 %v64, %v62
  %v69 = vpack.c.b16 %v65, %v63
  %v106 = vunpack.c.l.b16 %v22
  %v107 = vunpack.c.l.b16 %v23
  %v108 = vunpack.c.l.b16 %v24
  %v109 = vunpack.c.l.b16 %v25
  %v110 = vunpack.c.l.b16 %v26
  %v111 = vunpack.c.l.b16 %v27
  %v112 = vunpack.c.l.b16 %v28
  %v113 = vunpack.c.l.b16 %v29
  %v114 = vunpack.c.l.b16 %v30
  %v115 = vunpack.c.l.b16 %v31
  %v116 = vunpack.c.l.b16 %v32
  %v117 = vunpack.c.l.b16 %v33
  %v118 = vunpack.c.l.b16 %v34
  %v119 = vunpack.c.l.b16 %v35
  %v120 = vunpack.c.l.b16 %v36
  %v121 = vunpack.c.l.b16 %v37
  %v122 = vunpack.c.l.b16 %v38
  %v123 = vunpack.c.l.b16 %v39
  %v124 = vunpack.c.l.b16 %v40
  %v125 = vunpack.c.l.b16 %v41
  %v126 = vunpack.c.l.b16 %v42
  %v127 = vunpack.c.l.b16 %v43
  %v128 = vunpack.c.l.b16 %v44
  %v129 = vunpack.c.l.b16 %v45
  %v130 = vunpack.c.l.b16 %v46
  %v131 = vunpack.c.l.b16 %v47
  %v132 = vunpack.c.l.b16 %v48
  %v133 = vunpack.c.l.b16 %v49
  %v134 = vunpack.c.l.b16 %v50
  %v135 = vunpack.c.l.b16 %v51
  %v136 = vunpack.c.l.b16 %v52
  %v137 = vunpack.c.l.b16 %v53
  %v138 = vpack.c.b16 %v107, %v106
  %v139 = vpack.c.b16 %v109, %v108
  %v140 = vpack.c.b16 %v111, %v110
  %v141 = vpack.c.b16 %v113, %v112
  %v142 = vpack.c.b16 %v115, %v114
  %v143 = vpack.c.b16 %v117, %v116
  %v144 = vpack.c.b16 %v119, %v118
  %v145 = vpack.c.b16 %v121, %v120
  %v146 = vpack.c.b16 %v123, %v122
  %v147 = vpack.c.b16 %v125, %v124
  %v148 = vpack.c.b16 %v127, %v126
  %v149 = vpack.c.b16 %v129, %v128
  %v150 = vpack.c.b16 %v131, %v130
  %v151 = vpack.c.b16 %v133, %v132
  %v152 = vpack.c.b16 %v135, %v134
  %v153 = vpack.c.b16 %v137, %v136
  %170 = vmatprep.subr.bf16.mxu0 0
  %171 = vmatpush1.bf16.msra.mxu0 %v138
  %172 = vmatprep.subr.bf16.mxu0 0
  %173 = vmatpush1.bf16.msra.mxu0 %v139
  %174 = vmatprep.subr.bf16.mxu0 0
  %175 = vmatpush1.bf16.msra.mxu0 %v140
  %176 = vmatprep.subr.bf16.mxu0 0
  %177 = vmatpush1.bf16.msra.mxu0 %v141
  %178 = vmatprep.subr.bf16.mxu0 0
  %179 = vmatpush1.bf16.msra.mxu0 %v142
  %180 = vmatprep.subr.bf16.mxu0 0
  %181 = vmatpush1.bf16.msra.mxu0 %v143
  %182 = vmatprep.subr.bf16.mxu0 0
  %183 = vmatpush1.bf16.msra.mxu0 %v144
  %184 = vmatprep.subr.bf16.mxu0 0
  %185 = vmatpush1.bf16.msra.mxu0 %v145
  %186 = vmatprep.subr.bf16.mxu0 0
  %187 = vmatpush1.bf16.msra.mxu0 %v146
  %188 = vmatprep.subr.bf16.mxu0 0
  %189 = vmatpush1.bf16.msra.mxu0 %v147
  %190 = vmatprep.subr.bf16.mxu0 0
  %191 = vmatpush1.bf16.msra.mxu0 %v148
  %192 = vmatprep.subr.bf16.mxu0 0
  %193 = vmatpush1.bf16.msra.mxu0 %v149
  %194 = vmatprep.subr.bf16.mxu0 0
  %195 = vmatpush1.bf16.msra.mxu0 %v150
  %196 = vmatprep.subr.bf16.mxu0 0
  %197 = vmatpush1.bf16.msra.mxu0 %v151
  %198 = vmatprep.subr.bf16.mxu0 0
  %199 = vmatpush1.bf16.msra.mxu0 %v152
  %200 = vmatprep.subr.bf16.mxu0 0
  %201 = vmatpush1.bf16.msra.mxu0 %v153
  %202 = vmatprep.mubr.bf16.mxu0 %v67
  %203 = vmatmul.mubr.bf16.gmra.mrb[0].mxu0 %v66
  %v204 = vpop.f32.mrb[0].mxu0
  %v205 = vadd.f32 0.0, %v204
  %v206 = vpop.f32.mrb[0].mxu0
  %v207 = vpop.f32.mrb[0].mxu0
  %v208 = vadd.f32 0.0, %v207
  %v209 = vpop.f32.mrb[0].mxu0
  %210 = vmatprep.mubr.bf16.mxu0 %v69
  %211 = vmatmul.mubr.bf16.gmra.mrb[0].mxu0 %v68
  %v212 = vpop.f32.mrb[0].mxu0
  %v213 = vadd.f32 0.0, %v212
  %v214 = vpop.f32.mrb[0].mxu0
  %v215 = vpop.f32.mrb[0].mxu0
  %v216 = vadd.f32 0.0, %v215
  %v217 = vpop.f32.mrb[0].mxu0
  %218 = vdwg.mxu0
  %v219 = vld [vmem:[%s2] sm:$0x1]
  %v221 = vlaneseq
  %v222 = vshrl.u32 %v221, 7
  %v223 = vsub.s32 0, %v222
  %v224 = vrot.slane %v219, %v223
  %v226 = vmul.f32 %v205, %v224
  %v227 = vmul.f32 %v208, %v224
  %v228 = vmul.f32 %v213, %v224
  %v229 = vmul.f32 %v216, %v224
  %v230 = vld [vmem:[%s3] sm:$0x1]
  %v232 = vlaneseq
  %v233 = vshrl.u32 %v232, 7
  %v234 = vsub.s32 0, %v233
  %v235 = vrot.slane %v230, %v234
  %v237 = vadd.f32 %v226, %v235
  %v238 = vadd.f32 %v227, %v235
  %v239 = vadd.f32 %v228, %v235
  %v240 = vadd.f32 %v229, %v235
  %vm241 = vcmp.gt.f32.partialorder %v237, 0.0
  %vm242 = vcmp.gt.f32.partialorder %v238, 0.0
  %vm243 = vcmp.gt.f32.partialorder %v239, 0.0
  %vm244 = vcmp.gt.f32.partialorder %v240, 0.0
  %v245 = vmul.f32 %v237, 0.05
  %v246 = vmul.f32 %v238, 0.05
  %v247 = vmul.f32 %v239, 0.05
  %v248 = vmul.f32 %v240, 0.05
  %v249 = vsel %vm241, %v237, %v245
  %v250 = vsel %vm242, %v238, %v246
  %v251 = vsel %vm243, %v239, %v247
  %v252 = vsel %vm244, %v240, %v248
  %v253 = vpack.c.bf16 %v250, %v249
  %v254 = vpack.c.bf16 %v252, %v251
  %v257 = vunpack.c.l.b16 %v253
  %v258 = vunpack.c.h.b16 %v253
  %v259 = vunpack.c.l.b16 %v254
  %v260 = vunpack.c.h.b16 %v254
  %v261 = vpack.c.b16 %v257, %v257
  %v262 = vpack.c.b16 %v258, %v258
  %v263 = vpack.c.b16 %v259, %v259
  %v264 = vpack.c.b16 %v260, %v260
  %269 = vst [vmem:[%s4] sm:$0xf] %v261
  %270 = vst [vmem:[%s4 + $0x4] sm:$0xf] %v262
  %271 = vst [vmem:[%s4 + $0x8] sm:$0xf] %v263
  %272 = vst [vmem:[%s4 + $0xc] sm:$0xf] %v264
  // Predicated region
  $region18: #{gan_a_forward.14} parent=0 // pred_check
    _
  $region19: #{gan_a_forward.14} parent=0 // pred_check_branch
    %274 = sbr.rel (0) target = $region21
  $region20: #{gan_a_forward.14} parent=0 // pred_region
    _
  $region21: #{gan_a_forward.14} parent=0 // pred_fallthru
    _
  // Predicated region
  $region22: #{gan_a_forward.14} parent=0 // pred_check
    _
  $region23: #{gan_a_forward.14} parent=0 // pred_check_branch
    %276 = sbr.rel (0) target = $region25
  $region24: #{gan_a_forward.14} parent=0 // pred_region
    _
  $region25: #{gan_a_forward.14} parent=0 // pred_fallthru
    _

// kernel: tile.13
$region0: #{tile.13}
  #allocation0 [shape = 's32[1]{0}', space=sflag, size = 0x4, scoped, tag = 'scoped memory for tile.13']
  %s0 = inlined_call_operand.vmem [shape: f32[16], index: 0, kind: input, shape index: {}]
  %s1 = inlined_call_operand.vmem [shape: f32[4,16], index: 1, kind: output, shape index: {}]
  // Predicated region
  $region2: #{tile.13} parent=0 // pred_check
    _
  $region3: #{tile.13} parent=0 // pred_check_branch
    %3 = sbr.rel (0) target = $region5
  $region4: #{tile.13} parent=0 // pred_region
    _
  $region5: #{tile.13} parent=0 // pred_fallthru
    _
  %v4 = vld [vmem:[%s0] ss:$0 sm:$0xff]
  %5 = vst [vmem:[%s1] sm:$0xf] %v4

// kernel: gan_a_forward.16
$region0: #{gan_a_forward.16}
  #allocation0 [shape = 'u32[]', space=smem, size = 0x4, offset = 0x4, fixed_abs, tag = 'smem constant byte address 0x4 - core index']
  #allocation1 [shape = 'u32[144,128]{1,0:T(1,128)}', space=vmem, size = 0x12000, scoped, tag = 'internal scratch']
  %s0 = inlined_call_operand.vmem [shape: bf16[32,384], index: 0, kind: input, shape index: {}]
  %s1 = inlined_call_operand.vmem [shape: bf16[384,128], index: 1, kind: input, shape index: {}]
  %s2 = inlined_call_operand.vmem [shape: f32[1,128], index: 2, kind: input, shape index: {}]
  %s3 = inlined_call_operand.vmem [shape: f32[1,128], index: 3, kind: input, shape index: {}]
  %s4 = inlined_call_operand.vmem [shape: bf16[32,128], index: 4, kind: output, shape index: {}]
  %s5 = sld [smem:[#allocation0]]
  $region26: #{gan_a_forward.16} parent=0
    _
  %s7 = ssub.s32 1, %s5
  %s8 = scalar_select 0, %s7, %s5
  // Predicated region
  $region2: #{gan_a_forward.16} parent=0 // pred_check
    _
  $region3: #{gan_a_forward.16} parent=0 // pred_check_branch
    %10 = sbr.rel (0) target = $region5
  $region4: #{gan_a_forward.16} parent=0 // pred_region
    _
  $region5: #{gan_a_forward.16} parent=0 // pred_fallthru
    _
  // Predicated region
  $region6: #{gan_a_forward.16} parent=0 // pred_check
    _
  $region7: #{gan_a_forward.16} parent=0 // pred_check_branch
    %12 = sbr.rel (0) target = $region9
  $region8: #{gan_a_forward.16} parent=0 // pred_region
    _
  $region9: #{gan_a_forward.16} parent=0 // pred_fallthru
    _
  // Predicated region
  $region10: #{gan_a_forward.16} parent=0 // pred_check
    _
  $region11: #{gan_a_forward.16} parent=0 // pred_check_branch
    %14 = sbr.rel (0) target = $region13
  $region12: #{gan_a_forward.16} parent=0 // pred_region
    _
  $region13: #{gan_a_forward.16} parent=0 // pred_fallthru
    _
  // Predicated region
  $region14: #{gan_a_forward.16} parent=0 // pred_check
    _
  $region15: #{gan_a_forward.16} parent=0 // pred_check_branch
    %16 = sbr.rel (0) target = $region17
  $region16: #{gan_a_forward.16} parent=0 // pred_region
    _
  $region17: #{gan_a_forward.16} parent=0 // pred_fallthru
    _
  %v18 = vld [vmem:[%s0] sm:$0xff]
  %v19 = vld [vmem:[%s0 + $0x8] sm:$0xf]
  %v20 = vld [vmem:[%s0 + $0xc] sm:$0xff]
  %v21 = vld [vmem:[%s0 + $0x14] sm:$0xf]
  %v22 = vld [vmem:[%s0 + $0x18] sm:$0xff]
  %v23 = vld [vmem:[%s0 + $0x20] sm:$0xf]
  %v24 = vld [vmem:[%s0 + $0x24] sm:$0xff]
  %v25 = vld [vmem:[%s0 + $0x2c] sm:$0xf]
  %v26 = vld [vmem:[%s1] sm:$0xf]
  %v27 = vld [vmem:[%s1 + $0x4] sm:$0xf]
  %v28 = vld [vmem:[%s1 + $0x8] sm:$0xf]
  %v29 = vld [vmem:[%s1 + $0xc] sm:$0xf]
  %v30 = vld [vmem:[%s1 + $0x10] sm:$0xf]
  %v31 = vld [vmem:[%s1 + $0x14] sm:$0xf]
  %v32 = vld [vmem:[%s1 + $0x18] sm:$0xf]
  %v33 = vld [vmem:[%s1 + $0x1c] sm:$0xf]
  %v34 = vld [vmem:[%s1 + $0x20] sm:$0xf]
  %v35 = vld [vmem:[%s1 + $0x24] sm:$0xf]
  %v36 = vld [vmem:[%s1 + $0x28] sm:$0xf]
  %v37 = vld [vmem:[%s1 + $0x2c] sm:$0xf]
  %v38 = vld [vmem:[%s1 + $0x30] sm:$0xf]
  %v39 = vld [vmem:[%s1 + $0x34] sm:$0xf]
  %v40 = vld [vmem:[%s1 + $0x38] sm:$0xf]
  %v41 = vld [vmem:[%s1 + $0x3c] sm:$0xf]
  %v42 = vld [vmem:[%s1 + $0x40] sm:$0xf]
  %v43 = vld [vmem:[%s1 + $0x44] sm:$0xf]
  %v44 = vld [vmem:[%s1 + $0x48] sm:$0xf]
  %v45 = vld [vmem:[%s1 + $0x4c] sm:$0xf]
  %v46 = vld [vmem:[%s1 + $0x50] sm:$0xf]
  %v47 = vld [vmem:[%s1 + $0x54] sm:$0xf]
  %v48 = vld [vmem:[%s1 + $0x58] sm:$0xf]
  %v49 = vld [vmem:[%s1 + $0x5c] sm:$0xf]
  %v50 = vld [vmem:[%s1 + $0x60] sm:$0xf]
  %v51 = vld [vmem:[%s1 + $0x64] sm:$0xf]
  %v52 = vld [vmem:[%s1 + $0x68] sm:$0xf]
  %v53 = vld [vmem:[%s1 + $0x6c] sm:$0xf]
  %v54 = vld [vmem:[%s1 + $0x70] sm:$0xf]
  %v55 = vld [vmem:[%s1 + $0x74] sm:$0xf]
  %v56 = vld [vmem:[%s1 + $0x78] sm:$0xf]
  %v57 = vld [vmem:[%s1 + $0x7c] sm:$0xf]
  %v58 = vld [vmem:[%s1 + $0x80] sm:$0xf]
  %v59 = vld [vmem:[%s1 + $0x84] sm:$0xf]
  %v60 = vld [vmem:[%s1 + $0x88] sm:$0xf]
  %v61 = vld [vmem:[%s1 + $0x8c] sm:$0xf]
  %v62 = vld [vmem:[%s1 + $0x90] sm:$0xf]
  %v63 = vld [vmem:[%s1 + $0x94] sm:$0xf]
  %v64 = vld [vmem:[%s1 + $0x98] sm:$0xf]
  %v65 = vld [vmem:[%s1 + $0x9c] sm:$0xf]
  %v66 = vld [vmem:[%s1 + $0xa0] sm:$0xf]
  %v67 = vld [vmem:[%s1 + $0xa4] sm:$0xf]
  %v68 = vld [vmem:[%s1 + $0xa8] sm:$0xf]
  %v69 = vld [vmem:[%s1 + $0xac] sm:$0xf]
  %v70 = vld [vmem:[%s1 + $0xb0] sm:$0xf]
  %v71 = vld [vmem:[%s1 + $0xb4] sm:$0xf]
  %v72 = vld [vmem:[%s1 + $0xb8] sm:$0xf]
  %v73 = vld [vmem:[%s1 + $0xbc] sm:$0xf]
  %v82 = vunpack.c.l.b16 %v18
  %v83 = vunpack.c.h.b16 %v18
  %v84 = vunpack.c.l.b16 %v19
  %v85 = vunpack.c.l.b16 %v20
  %v86 = vunpack.c.h.b16 %v20
  %v87 = vunpack.c.l.b16 %v21
  %v88 = vunpack.c.l.b16 %v22
  %v89 = vunpack.c.h.b16 %v22
  %v90 = vunpack.c.l.b16 %v23
  %v91 = vunpack.c.l.b16 %v24
  %v92 = vunpack.c.h.b16 %v24
  %v93 = vunpack.c.l.b16 %v25
  %v94 = vpack.c.b16 %v85, %v82
  %v95 = vpack.c.b16 %v86, %v83
  %v96 = vpack.c.b16 %v87, %v84
  %v97 = vpack.c.b16 %v91, %v88
  %v98 = vpack.c.b16 %v92, %v89
  %v99 = vpack.c.b16 %v93, %v90
  %v154 = vunpack.c.l.b16 %v26
  %v155 = vunpack.c.l.b16 %v27
  %v156 = vunpack.c.l.b16 %v28
  %v157 = vunpack.c.l.b16 %v29
  %v158 = vunpack.c.l.b16 %v30
  %v159 = vunpack.c.l.b16 %v31
  %v160 = vunpack.c.l.b16 %v32
  %v161 = vunpack.c.l.b16 %v33
  %v162 = vunpack.c.l.b16 %v34
  %v163 = vunpack.c.l.b16 %v35
  %v164 = vunpack.c.l.b16 %v36
  %v165 = vunpack.c.l.b16 %v37
  %v166 = vunpack.c.l.b16 %v38
  %v167 = vunpack.c.l.b16 %v39
  %v168 = vunpack.c.l.b16 %v40
  %v169 = vunpack.c.l.b16 %v41
  %v170 = vunpack.c.l.b16 %v42
  %v171 = vunpack.c.l.b16 %v43
  %v172 = vunpack.c.l.b16 %v44
  %v173 = vunpack.c.l.b16 %v45
  %v174 = vunpack.c.l.b16 %v46
  %v175 = vunpack.c.l.b16 %v47
  %v176 = vunpack.c.l.b16 %v48
  %v177 = vunpack.c.l.b16 %v49
  %v178 = vunpack.c.l.b16 %v50
  %v179 = vunpack.c.l.b16 %v51
  %v180 = vunpack.c.l.b16 %v52
  %v181 = vunpack.c.l.b16 %v53
  %v182 = vunpack.c.l.b16 %v54
  %v183 = vunpack.c.l.b16 %v55
  %v184 = vunpack.c.l.b16 %v56
  %v185 = vunpack.c.l.b16 %v57
  %v186 = vunpack.c.l.b16 %v58
  %v187 = vunpack.c.l.b16 %v59
  %v188 = vunpack.c.l.b16 %v60
  %v189 = vunpack.c.l.b16 %v61
  %v190 = vunpack.c.l.b16 %v62
  %v191 = vunpack.c.l.b16 %v63
  %v192 = vunpack.c.l.b16 %v64
  %v193 = vunpack.c.l.b16 %v65
  %v194 = vunpack.c.l.b16 %v66
  %v195 = vunpack.c.l.b16 %v67
  %v196 = vunpack.c.l.b16 %v68
  %v197 = vunpack.c.l.b16 %v69
  %v198 = vunpack.c.l.b16 %v70
  %v199 = vunpack.c.l.b16 %v71
  %v200 = vunpack.c.l.b16 %v72
  %v201 = vunpack.c.l.b16 %v73
  %v202 = vpack.c.b16 %v155, %v154
  %v203 = vpack.c.b16 %v157, %v156
  %v204 = vpack.c.b16 %v159, %v158
  %v205 = vpack.c.b16 %v161, %v160
  %v206 = vpack.c.b16 %v163, %v162
  %v207 = vpack.c.b16 %v165, %v164
  %v208 = vpack.c.b16 %v167, %v166
  %v209 = vpack.c.b16 %v169, %v168
  %v210 = vpack.c.b16 %v171, %v170
  %v211 = vpack.c.b16 %v173, %v172
  %v212 = vpack.c.b16 %v175, %v174
  %v213 = vpack.c.b16 %v177, %v176
  %v214 = vpack.c.b16 %v179, %v178
  %v215 = vpack.c.b16 %v181, %v180
  %v216 = vpack.c.b16 %v183, %v182
  %v217 = vpack.c.b16 %v185, %v184
  %v218 = vpack.c.b16 %v187, %v186
  %v219 = vpack.c.b16 %v189, %v188
  %v220 = vpack.c.b16 %v191, %v190
  %v221 = vpack.c.b16 %v193, %v192
  %v222 = vpack.c.b16 %v195, %v194
  %v223 = vpack.c.b16 %v197, %v196
  %v224 = vpack.c.b16 %v199, %v198
  %v225 = vpack.c.b16 %v201, %v200
  %250 = vmatprep.subr.bf16.mxu0 0
  %251 = vmatpush1.bf16.msra.mxu0 %v202
  %252 = vmatprep.subr.bf16.mxu0 0
  %253 = vmatpush1.bf16.msra.mxu0 %v203
  %254 = vmatprep.subr.bf16.mxu0 0
  %255 = vmatpush1.bf16.msra.mxu0 %v204
  %256 = vmatprep.subr.bf16.mxu0 0
  %257 = vmatpush1.bf16.msra.mxu0 %v205
  %258 = vmatprep.subr.bf16.mxu0 0
  %259 = vmatpush1.bf16.msra.mxu0 %v206
  %260 = vmatprep.subr.bf16.mxu0 0
  %261 = vmatpush1.bf16.msra.mxu0 %v207
  %262 = vmatprep.subr.bf16.mxu0 0
  %263 = vmatpush1.bf16.msra.mxu0 %v208
  %264 = vmatprep.subr.bf16.mxu0 0
  %265 = vmatpush1.bf16.msra.mxu0 %v209
  %266 = vmatprep.subr.bf16.mxu0 0
  %267 = vmatpush1.bf16.msra.mxu0 %v210
  %268 = vmatprep.subr.bf16.mxu0 0
  %269 = vmatpush1.bf16.msra.mxu0 %v211
  %270 = vmatprep.subr.bf16.mxu0 0
  %271 = vmatpush1.bf16.msra.mxu0 %v212
  %272 = vmatprep.subr.bf16.mxu0 0
  %273 = vmatpush1.bf16.msra.mxu0 %v213
  %274 = vmatprep.subr.bf16.mxu0 0
  %275 = vmatpush1.bf16.msra.mxu0 %v214
  %276 = vmatprep.subr.bf16.mxu0 0
  %277 = vmatpush1.bf16.msra.mxu0 %v215
  %278 = vmatprep.subr.bf16.mxu0 0
  %279 = vmatpush1.bf16.msra.mxu0 %v216
  %280 = vmatprep.subr.bf16.mxu0 0
  %281 = vmatpush1.bf16.msra.mxu0 %v217
  %282 = vmatprep.mubr.bf16.mxu0 %v95
  %283 = vmatmul.mubr.bf16.gmra.mrb[0].mxu0 %v94
  %v284 = vpop.f32.mrb[0].mxu0
  %v285 = vadd.f32 0.0, %v284
  %v286 = vpop.f32.mrb[0].mxu0
  %v287 = vpop.f32.mrb[0].mxu0
  %v288 = vadd.f32 0.0, %v287
  %v289 = vpop.f32.mrb[0].mxu0
  %290 = vmatprep.mubr.bf16.mxu0 %v98
  %291 = vmatmul.mubr.bf16.gmra.mrb[0].mxu0 %v97
  %v292 = vpop.f32.mrb[0].mxu0
  %v293 = vadd.f32 0.0, %v292
  %v294 = vpop.f32.mrb[0].mxu0
  %v295 = vpop.f32.mrb[0].mxu0
  %v296 = vadd.f32 0.0, %v295
  %v297 = vpop.f32.mrb[0].mxu0
  %298 = vdwg.mxu0
  %299 = vmatprep.subr.bf16.mxu0 0
  %300 = vmatpush1.bf16.msra.mxu0 %v218
  %301 = vmatprep.subr.bf16.mxu0 0
  %302 = vmatpush1.bf16.msra.mxu0 %v219
  %303 = vmatprep.subr.bf16.mxu0 0
  %304 = vmatpush1.bf16.msra.mxu0 %v220
  %305 = vmatprep.subr.bf16.mxu0 0
  %306 = vmatpush1.bf16.msra.mxu0 %v221
  %307 = vmatprep.subr.bf16.mxu0 0
  %308 = vmatpush1.bf16.msra.mxu0 %v222
  %309 = vmatprep.subr.bf16.mxu0 0
  %310 = vmatpush1.bf16.msra.mxu0 %v223
  %311 = vmatprep.subr.bf16.mxu0 0
  %312 = vmatpush1.bf16.msra.mxu0 %v224
  %313 = vmatprep.subr.bf16.mxu0 0
  %314 = vmatpush1.bf16.msra.mxu0 %v225
  %315 = vmatprep.subr.bf16.mxu0 0
  %316 = vmatpush1.bf16.msra.mxu0 0
  %317 = vmatprep.subr.bf16.mxu0 0
  %318 = vmatpush1.bf16.msra.mxu0 0
  %319 = vmatprep.subr.bf16.mxu0 0
  %320 = vmatpush1.bf16.msra.mxu0 0
  %321 = vmatprep.subr.bf16.mxu0 0
  %322 = vmatpush1.bf16.msra.mxu0 0
  %323 = vmatprep.subr.bf16.mxu0 0
  %324 = vmatpush1.bf16.msra.mxu0 0
  %325 = vmatprep.subr.bf16.mxu0 0
  %326 = vmatpush1.bf16.msra.mxu0 0
  %327 = vmatprep.subr.bf16.mxu0 0
  %328 = vmatpush1.bf16.msra.mxu0 0
  %329 = vmatprep.subr.bf16.mxu0 0
  %330 = vmatpush1.bf16.msra.mxu0 0
  %331 = vmatprep.mubr.bf16.mxu0 0
  %332 = vmatmul.mubr.bf16.gmra.mrb[0].mxu0 %v96
  %v333 = vpop.f32.mrb[0].mxu0
  %v334 = vadd.f32 %v285, %v333
  %v335 = vpop.f32.mrb[0].mxu0
  %v336 = vpop.f32.mrb[0].mxu0
  %v337 = vadd.f32 %v288, %v336
  %v338 = vpop.f32.mrb[0].mxu0
  %339 = vmatprep.mubr.bf16.mxu0 0
  %340 = vmatmul.mubr.bf16.gmra.mrb[0].mxu0 %v99
  %v341 = vpop.f32.mrb[0].mxu0
  %v342 = vadd.f32 %v293, %v341
  %v343 = vpop.f32.mrb[0].mxu0
  %v344 = vpop.f32.mrb[0].mxu0
  %v345 = vadd.f32 %v296, %v344
  %v346 = vpop.f32.mrb[0].mxu0
  %347 = vdwg.mxu0
  %v348 = vld [vmem:[%s2] sm:$0x1]
  %v350 = vlaneseq
  %v351 = vshrl.u32 %v350, 7
  %v352 = vsub.s32 0, %v351
  %v353 = vrot.slane %v348, %v352
  %v355 = vmul.f32 %v334, %v353
  %v356 = vmul.f32 %v337, %v353
  %v357 = vmul.f32 %v342, %v353
  %v358 = vmul.f32 %v345, %v353
  %v359 = vld [vmem:[%s3] sm:$0x1]
  %v361 = vlaneseq
  %v362 = vshrl.u32 %v361, 7
  %v363 = vsub.s32 0, %v362
  %v364 = vrot.slane %v359, %v363
  %v366 = vadd.f32 %v355, %v364
  %v367 = vadd.f32 %v356, %v364
  %v368 = vadd.f32 %v357, %v364
  %v369 = vadd.f32 %v358, %v364
  %vm370 = vcmp.gt.f32.partialorder %v366, 0.0
  %vm371 = vcmp.gt.f32.partialorder %v367, 0.0
  %vm372 = vcmp.gt.f32.partialorder %v368, 0.0
  %vm373 = vcmp.gt.f32.partialorder %v369, 0.0
  %v374 = vmul.f32 %v366, 0.05
  %v375 = vmul.f32 %v367, 0.05
  %v376 = vmul.f32 %v368, 0.05
  %v377 = vmul.f32 %v369, 0.05
  %v378 = vsel %vm370, %v366, %v374
  %v379 = vsel %vm371, %v367, %v375
  %v380 = vsel %vm372, %v368, %v376
  %v381 = vsel %vm373, %v369, %v377
  %v382 = vpack.c.bf16 %v379, %v378
  %v383 = vpack.c.bf16 %v381, %v380
  %v386 = vunpack.c.l.b16 %v382
  %v387 = vunpack.c.h.b16 %v382
  %v388 = vunpack.c.l.b16 %v383
  %v389 = vunpack.c.h.b16 %v383
  %v390 = vpack.c.b16 %v386, %v386
  %v391 = vpack.c.b16 %v387, %v387
  %v392 = vpack.c.b16 %v388, %v388
  %v393 = vpack.c.b16 %v389, %v389
  %398 = vst [vmem:[%s4] sm:$0xf] %v390
  %399 = vst [vmem:[%s4 + $0x4] sm:$0xf] %v391
  %400 = vst [vmem:[%s4 + $0x8] sm:$0xf] %v392
  %401 = vst [vmem:[%s4 + $0xc] sm:$0xf] %v393
  // Predicated region
  $region18: #{gan_a_forward.16} parent=0 // pred_check
    _
  $region19: #{gan_a_forward.16} parent=0 // pred_check_branch
    %403 = sbr.rel (0) target = $region21
  $region20: #{gan_a_forward.16} parent=0 // pred_region
    _
  $region21: #{gan_a_forward.16} parent=0 // pred_fallthru
    _
  // Predicated region
  $region22: #{gan_a_forward.16} parent=0 // pred_check
    _
  $region23: #{gan_a_forward.16} parent=0 // pred_check_branch
    %405 = sbr.rel (0) target = $region25
  $region24: #{gan_a_forward.16} parent=0 // pred_region
    _
  $region25: #{gan_a_forward.16} parent=0 // pred_fallthru
    _

// kernel: gan_a_forward.15
$region0: #{gan_a_forward.15}
  #allocation0 [shape = 'u32[]', space=smem, size = 0x4, offset = 0x4, fixed_abs, tag = 'smem constant byte address 0x4 - core index']
  #allocation1 [shape = 'u32[144,128]{1,0:T(1,128)}', space=vmem, size = 0x12000, scoped, tag = 'internal scratch']
  %s0 = inlined_call_operand.vmem [shape: bf16[32,384], index: 0, kind: input, shape index: {}]
  %s1 = inlined_call_operand.vmem [shape: bf16[384,128], index: 1, kind: input, shape index: {}]
  %s2 = inlined_call_operand.vmem [shape: f32[1,128], index: 2, kind: output, shape index: {0}]
  %s3 = inlined_call_operand.vmem [shape: f32[1,128], index: 3, kind: output, shape index: {1}]
  %4 = xla_tuple %s2, %s3
  %s5 = sld [smem:[#allocation0]]
  $region30: #{gan_a_forward.15} parent=0
    _
  %s7 = ssub.s32 1, %s5
  %s8 = scalar_select 0, %s7, %s5
  // Predicated region
  $region2: #{gan_a_forward.15} parent=0 // pred_check
    _
  $region3: #{gan_a_forward.15} parent=0 // pred_check_branch
    %10 = sbr.rel (0) target = $region5
  $region4: #{gan_a_forward.15} parent=0 // pred_region
    _
  $region5: #{gan_a_forward.15} parent=0 // pred_fallthru
    _
  // Predicated region
  $region6: #{gan_a_forward.15} parent=0 // pred_check
    _
  $region7: #{gan_a_forward.15} parent=0 // pred_check_branch
    %12 = sbr.rel (0) target = $region9
  $region8: #{gan_a_forward.15} parent=0 // pred_region
    _
  $region9: #{gan_a_forward.15} parent=0 // pred_fallthru
    _
  %p14 = scmp.eq.s32.totalorder 0, 0
  // Predicated region
  $region10: #{gan_a_forward.15} parent=0 // pred_check
    %p15 = pneg %p14
  $region11: #{gan_a_forward.15} parent=0 // pred_check_branch
    %17 = sbr.rel (%p15) target = $region13
  $region12: #{gan_a_forward.15} parent=0 // pred_region
    %18 = vst [vmem:[%s2] sm:$0x1] 0.0
    %19 = vst [vmem:[%s3] sm:$0x1] 0.0
  $region13: #{gan_a_forward.15} parent=0 // pred_fallthru
    _
  %v20 = vld [vmem:[%s0] sm:$0xff]
  %v21 = vld [vmem:[%s0 + $0x8] sm:$0xf]
  %v22 = vld [vmem:[%s0 + $0xc] sm:$0xff]
  %v23 = vld [vmem:[%s0 + $0x14] sm:$0xf]
  %v24 = vld [vmem:[%s0 + $0x18] sm:$0xff]
  %v25 = vld [vmem:[%s0 + $0x20] sm:$0xf]
  %v26 = vld [vmem:[%s0 + $0x24] sm:$0xff]
  %v27 = vld [vmem:[%s0 + $0x2c] sm:$0xf]
  %v28 = vld [vmem:[%s1] sm:$0xf]
  %v29 = vld [vmem:[%s1 + $0x4] sm:$0xf]
  %v30 = vld [vmem:[%s1 + $0x8] sm:$0xf]
  %v31 = vld [vmem:[%s1 + $0xc] sm:$0xf]
  %v32 = vld [vmem:[%s1 + $0x10] sm:$0xf]
  %v33 = vld [vmem:[%s1 + $0x14] sm:$0xf]
  %v34 = vld [vmem:[%s1 + $0x18] sm:$0xf]
  %v35 = vld [vmem:[%s1 + $0x1c] sm:$0xf]
  %v36 = vld [vmem:[%s1 + $0x20] sm:$0xf]
  %v37 = vld [vmem:[%s1 + $0x24] sm:$0xf]
  %v38 = vld [vmem:[%s1 + $0x28] sm:$0xf]
  %v39 = vld [vmem:[%s1 + $0x2c] sm:$0xf]
  %v40 = vld [vmem:[%s1 + $0x30] sm:$0xf]
  %v41 = vld [vmem:[%s1 + $0x34] sm:$0xf]
  %v42 = vld [vmem:[%s1 + $0x38] sm:$0xf]
  %v43 = vld [vmem:[%s1 + $0x3c] sm:$0xf]
  %v44 = vld [vmem:[%s1 + $0x40] sm:$0xf]
  %v45 = vld [vmem:[%s1 + $0x44] sm:$0xf]
  %v46 = vld [vmem:[%s1 + $0x48] sm:$0xf]
  %v47 = vld [vmem:[%s1 + $0x4c] sm:$0xf]
  %v48 = vld [vmem:[%s1 + $0x50] sm:$0xf]
  %v49 = vld [vmem:[%s1 + $0x54] sm:$0xf]
  %v50 = vld [vmem:[%s1 + $0x58] sm:$0xf]
  %v51 = vld [vmem:[%s1 + $0x5c] sm:$0xf]
  %v52 = vld [vmem:[%s1 + $0x60] sm:$0xf]
  %v53 = vld [vmem:[%s1 + $0x64] sm:$0xf]
  %v54 = vld [vmem:[%s1 + $0x68] sm:$0xf]
  %v55 = vld [vmem:[%s1 + $0x6c] sm:$0xf]
  %v56 = vld [vmem:[%s1 + $0x70] sm:$0xf]
  %v57 = vld [vmem:[%s1 + $0x74] sm:$0xf]
  %v58 = vld [vmem:[%s1 + $0x78] sm:$0xf]
  %v59 = vld [vmem:[%s1 + $0x7c] sm:$0xf]
  %v60 = vld [vmem:[%s1 + $0x80] sm:$0xf]
  %v61 = vld [vmem:[%s1 + $0x84] sm:$0xf]
  %v62 = vld [vmem:[%s1 + $0x88] sm:$0xf]
  %v63 = vld [vmem:[%s1 + $0x8c] sm:$0xf]
  %v64 = vld [vmem:[%s1 + $0x90] sm:$0xf]
  %v65 = vld [vmem:[%s1 + $0x94] sm:$0xf]
  %v66 = vld [vmem:[%s1 + $0x98] sm:$0xf]
  %v67 = vld [vmem:[%s1 + $0x9c] sm:$0xf]
  %v68 = vld [vmem:[%s1 + $0xa0] sm:$0xf]
  %v69 = vld [vmem:[%s1 + $0xa4] sm:$0xf]
  %v70 = vld [vmem:[%s1 + $0xa8] sm:$0xf]
  %v71 = vld [vmem:[%s1 + $0xac] sm:$0xf]
  %v72 = vld [vmem:[%s1 + $0xb0] sm:$0xf]
  %v73 = vld [vmem:[%s1 + $0xb4] sm:$0xf]
  %v74 = vld [vmem:[%s1 + $0xb8] sm:$0xf]
  %v75 = vld [vmem:[%s1 + $0xbc] sm:$0xf]
  %v84 = vunpack.c.l.b16 %v20
  %v85 = vunpack.c.h.b16 %v20
  %v86 = vunpack.c.l.b16 %v21
  %v87 = vunpack.c.l.b16 %v22
  %v88 = vunpack.c.h.b16 %v22
  %v89 = vunpack.c.l.b16 %v23
  %v90 = vunpack.c.l.b16 %v24
  %v91 = vunpack.c.h.b16 %v24
  %v92 = vunpack.c.l.b16 %v25
  %v93 = vunpack.c.l.b16 %v26
  %v94 = vunpack.c.h.b16 %v26
  %v95 = vunpack.c.l.b16 %v27
  %v96 = vpack.c.b16 %v87, %v84
  %v97 = vpack.c.b16 %v88, %v85
  %v98 = vpack.c.b16 %v89, %v86
  %v99 = vpack.c.b16 %v93, %v90
  %v100 = vpack.c.b16 %v94, %v91
  %v101 = vpack.c.b16 %v95, %v92
  %v156 = vunpack.c.l.b16 %v28
  %v157 = vunpack.c.l.b16 %v29
  %v158 = vunpack.c.l.b16 %v30
  %v159 = vunpack.c.l.b16 %v31
  %v160 = vunpack.c.l.b16 %v32
  %v161 = vunpack.c.l.b16 %v33
  %v162 = vunpack.c.l.b16 %v34
  %v163 = vunpack.c.l.b16 %v35
  %v164 = vunpack.c.l.b16 %v36
  %v165 = vunpack.c.l.b16 %v37
  %v166 = vunpack.c.l.b16 %v38
  %v167 = vunpack.c.l.b16 %v39
  %v168 = vunpack.c.l.b16 %v40
  %v169 = vunpack.c.l.b16 %v41
  %v170 = vunpack.c.l.b16 %v42
  %v171 = vunpack.c.l.b16 %v43
  %v172 = vunpack.c.l.b16 %v44
  %v173 = vunpack.c.l.b16 %v45
  %v174 = vunpack.c.l.b16 %v46
  %v175 = vunpack.c.l.b16 %v47
  %v176 = vunpack.c.l.b16 %v48
  %v177 = vunpack.c.l.b16 %v49
  %v178 = vunpack.c.l.b16 %v50
  %v179 = vunpack.c.l.b16 %v51
  %v180 = vunpack.c.l.b16 %v52
  %v181 = vunpack.c.l.b16 %v53
  %v182 = vunpack.c.l.b16 %v54
  %v183 = vunpack.c.l.b16 %v55
  %v184 = vunpack.c.l.b16 %v56
  %v185 = vunpack.c.l.b16 %v57
  %v186 = vunpack.c.l.b16 %v58
  %v187 = vunpack.c.l.b16 %v59
  %v188 = vunpack.c.l.b16 %v60
  %v189 = vunpack.c.l.b16 %v61
  %v190 = vunpack.c.l.b16 %v62
  %v191 = vunpack.c.l.b16 %v63
  %v192 = vunpack.c.l.b16 %v64
  %v193 = vunpack.c.l.b16 %v65
  %v194 = vunpack.c.l.b16 %v66
  %v195 = vunpack.c.l.b16 %v67
  %v196 = vunpack.c.l.b16 %v68
  %v197 = vunpack.c.l.b16 %v69
  %v198 = vunpack.c.l.b16 %v70
  %v199 = vunpack.c.l.b16 %v71
  %v200 = vunpack.c.l.b16 %v72
  %v201 = vunpack.c.l.b16 %v73
  %v202 = vunpack.c.l.b16 %v74
  %v203 = vunpack.c.l.b16 %v75
  %v204 = vpack.c.b16 %v157, %v156
  %v205 = vpack.c.b16 %v159, %v158
  %v206 = vpack.c.b16 %v161, %v160
  %v207 = vpack.c.b16 %v163, %v162
  %v208 = vpack.c.b16 %v165, %v164
  %v209 = vpack.c.b16 %v167, %v166
  %v210 = vpack.c.b16 %v169, %v168
  %v211 = vpack.c.b16 %v171, %v170
  %v212 = vpack.c.b16 %v173, %v172
  %v213 = vpack.c.b16 %v175, %v174
  %v214 = vpack.c.b16 %v177, %v176
  %v215 = vpack.c.b16 %v179, %v178
  %v216 = vpack.c.b16 %v181, %v180
  %v217 = vpack.c.b16 %v183, %v182
  %v218 = vpack.c.b16 %v185, %v184
  %v219 = vpack.c.b16 %v187, %v186
  %v220 = vpack.c.b16 %v189, %v188
  %v221 = vpack.c.b16 %v191, %v190
  %v222 = vpack.c.b16 %v193, %v192
  %v223 = vpack.c.b16 %v195, %v194
  %v224 = vpack.c.b16 %v197, %v196
  %v225 = vpack.c.b16 %v199, %v198
  %v226 = vpack.c.b16 %v201, %v200
  %v227 = vpack.c.b16 %v203, %v202
  %252 = vmatprep.subr.bf16.mxu0 0
  %253 = vmatpush1.bf16.msra.mxu0 %v204
  %254 = vmatprep.subr.bf16.mxu0 0
  %255 = vmatpush1.bf16.msra.mxu0 %v205
  %256 = vmatprep.subr.bf16.mxu0 0
  %257 = vmatpush1.bf16.msra.mxu0 %v206
  %258 = vmatprep.subr.bf16.mxu0 0
  %259 = vmatpush1.bf16.msra.mxu0 %v207
  %260 = vmatprep.subr.bf16.mxu0 0
  %261 = vmatpush1.bf16.msra.mxu0 %v208
  %262 = vmatprep.subr.bf16.mxu0 0
  %263 = vmatpush1.bf16.msra.mxu0 %v209
  %264 = vmatprep.subr.bf16.mxu0 0
  %265 = vmatpush1.bf16.msra.mxu0 %v210
  %266 = vmatprep.subr.bf16.mxu0 0
  %267 = vmatpush1.bf16.msra.mxu0 %v211
  %268 = vmatprep.subr.bf16.mxu0 0
  %269 = vmatpush1.bf16.msra.mxu0 %v212
  %270 = vmatprep.subr.bf16.mxu0 0
  %271 = vmatpush1.bf16.msra.mxu0 %v213
  %272 = vmatprep.subr.bf16.mxu0 0
  %273 = vmatpush1.bf16.msra.mxu0 %v214
  %274 = vmatprep.subr.bf16.mxu0 0
  %275 = vmatpush1.bf16.msra.mxu0 %v215
  %276 = vmatprep.subr.bf16.mxu0 0
  %277 = vmatpush1.bf16.msra.mxu0 %v216
  %278 = vmatprep.subr.bf16.mxu0 0
  %279 = vmatpush1.bf16.msra.mxu0 %v217
  %280 = vmatprep.subr.bf16.mxu0 0
  %281 = vmatpush1.bf16.msra.mxu0 %v218
  %282 = vmatprep.subr.bf16.mxu0 0
  %283 = vmatpush1.bf16.msra.mxu0 %v219
  %284 = vmatprep.mubr.bf16.mxu0 %v97
  %285 = vmatmul.mubr.bf16.gmra.mrb[0].mxu0 %v96
  %v286 = vpop.f32.mrb[0].mxu0
  %v287 = vadd.f32 0.0, %v286
  %v288 = vpop.f32.mrb[0].mxu0
  %v289 = vpop.f32.mrb[0].mxu0
  %v290 = vadd.f32 0.0, %v289
  %v291 = vpop.f32.mrb[0].mxu0
  %292 = vmatprep.mubr.bf16.mxu0 %v100
  %293 = vmatmul.mubr.bf16.gmra.mrb[0].mxu0 %v99
  %v294 = vpop.f32.mrb[0].mxu0
  %v295 = vadd.f32 0.0, %v294
  %v296 = vpop.f32.mrb[0].mxu0
  %v297 = vpop.f32.mrb[0].mxu0
  %v298 = vadd.f32 0.0, %v297
  %v299 = vpop.f32.mrb[0].mxu0
  %300 = vdwg.mxu0
  %301 = vmatprep.subr.bf16.mxu0 0
  %302 = vmatpush1.bf16.msra.mxu0 %v220
  %303 = vmatprep.subr.bf16.mxu0 0
  %304 = vmatpush1.bf16.msra.mxu0 %v221
  %305 = vmatprep.subr.bf16.mxu0 0
  %306 = vmatpush1.bf16.msra.mxu0 %v222
  %307 = vmatprep.subr.bf16.mxu0 0
  %308 = vmatpush1.bf16.msra.mxu0 %v223
  %309 = vmatprep.subr.bf16.mxu0 0
  %310 = vmatpush1.bf16.msra.mxu0 %v224
  %311 = vmatprep.subr.bf16.mxu0 0
  %312 = vmatpush1.bf16.msra.mxu0 %v225
  %313 = vmatprep.subr.bf16.mxu0 0
  %314 = vmatpush1.bf16.msra.mxu0 %v226
  %315 = vmatprep.subr.bf16.mxu0 0
  %316 = vmatpush1.bf16.msra.mxu0 %v227
  %317 = vmatprep.subr.bf16.mxu0 0
  %318 = vmatpush1.bf16.msra.mxu0 0
  %319 = vmatprep.subr.bf16.mxu0 0
  %320 = vmatpush1.bf16.msra.mxu0 0
  %321 = vmatprep.subr.bf16.mxu0 0
  %322 = vmatpush1.bf16.msra.mxu0 0
  %323 = vmatprep.subr.bf16.mxu0 0
  %324 = vmatpush1.bf16.msra.mxu0 0
  %325 = vmatprep.subr.bf16.mxu0 0
  %326 = vmatpush1.bf16.msra.mxu0 0
  %327 = vmatprep.subr.bf16.mxu0 0
  %328 = vmatpush1.bf16.msra.mxu0 0
  %329 = vmatprep.subr.bf16.mxu0 0
  %330 = vmatpush1.bf16.msra.mxu0 0
  %331 = vmatprep.subr.bf16.mxu0 0
  %332 = vmatpush1.bf16.msra.mxu0 0
  %333 = vmatprep.mubr.bf16.mxu0 0
  %334 = vmatmul.mubr.bf16.gmra.mrb[0].mxu0 %v98
  %v335 = vpop.f32.mrb[0].mxu0
  %v336 = vadd.f32 %v287, %v335
  %v337 = vpop.f32.mrb[0].mxu0
  %v338 = vpop.f32.mrb[0].mxu0
  %v339 = vadd.f32 %v290, %v338
  %v340 = vpop.f32.mrb[0].mxu0
  %341 = vmatprep.mubr.bf16.mxu0 0
  %342 = vmatmul.mubr.bf16.gmra.mrb[0].mxu0 %v101
  %v343 = vpop.f32.mrb[0].mxu0
  %v344 = vadd.f32 %v295, %v343
  %v345 = vpop.f32.mrb[0].mxu0
  %v346 = vpop.f32.mrb[0].mxu0
  %v347 = vadd.f32 %v298, %v346
  %v348 = vpop.f32.mrb[0].mxu0
  %349 = vdwg.mxu0
  %v350 = vld [vmem:[%s2] sm:$0x1]
  %v351 = vadd.f32 %v336, %v339
  %v352 = vadd.f32 %v351, %v344
  %v353 = vadd.f32 %v352, %v347
  %v354 = vrot.slane %v353, 4
  %v355 = vadd.f32 %v353, %v354
  %v356 = vrot.slane %v355, 2
  %v357 = vadd.f32 %v355, %v356
  %v358 = vrot.slane %v357, 1
  %v359 = vadd.f32 %v357, %v358
  %v360 = vadd.f32 %v350, %v359
  %361 = vst [vmem:[%s2] sm:$0x1] %v360
  %v362 = vld [vmem:[%s3] sm:$0x1]
  %v363 = vmul.f32 %v336, %v336
  %v364 = vmul.f32 %v339, %v339
  %v365 = vmul.f32 %v344, %v344
  %v366 = vmul.f32 %v347, %v347
  %v367 = vadd.f32 %v363, %v364
  %v368 = vadd.f32 %v367, %v365
  %v369 = vadd.f32 %v368, %v366
  %v370 = vrot.slane %v369, 4
  %v371 = vadd.f32 %v369, %v370
  %v372 = vrot.slane %v371, 2
  %v373 = vadd.f32 %v371, %v372
  %v374 = vrot.slane %v373, 1
  %v375 = vadd.f32 %v373, %v374
  %v376 = vadd.f32 %v362, %v375
  %377 = vst [vmem:[%s3] sm:$0x1] %v376
  // Predicated region
  $region14: #{gan_a_forward.15} parent=0 // pred_check
    _
  $region15: #{gan_a_forward.15} parent=0 // pred_check_branch
    %379 = sbr.rel (0) target = $region17
  $region16: #{gan_a_forward.15} parent=0 // pred_region
    _
  $region17: #{gan_a_forward.15} parent=0 // pred_fallthru
    _
  // Predicated region
  $region18: #{gan_a_forward.15} parent=0 // pred_check
    _
  $region19: #{gan_a_forward.15} parent=0 // pred_check_branch
    %381 = sbr.rel (0) target = $region21
  $region20: #{gan_a_forward.15} parent=0 // pred_region
    _
  $region21: #{gan_a_forward.15} parent=0 // pred_fallthru
    _
  // Predicated region
  $region22: #{gan_a_forward.15} parent=0 // pred_check
    _
  $region23: #{gan_a_forward.15} parent=0 // pred_check_branch
    %383 = sbr.rel (0) target = $region25
  $region24: #{gan_a_forward.15} parent=0 // pred_region
    _
  $region25: #{gan_a_forward.15} parent=0 // pred_fallthru
    _
  // Predicated region
  $region26: #{gan_a_forward.15} parent=0 // pred_check
    _
  $region27: #{gan_a_forward.15} parent=0 // pred_check_branch
    %385 = sbr.rel (0) target = $region29
  $region28: #{gan_a_forward.15} parent=0 // pred_region
    _
  $region29: #{gan_a_forward.15} parent=0 // pred_fallthru
    _

// kernel: gan_a_forward.21
$region0: #{gan_a_forward.21}
  #allocation0 [shape = 'u32[]', space=smem, size = 0x4, offset = 0x4, fixed_abs, tag = 'smem constant byte address 0x4 - core index']
  #allocation1 [shape = 'u32[144,128]{1,0:T(1,128)}', space=vmem, size = 0x12000, scoped, tag = 'internal scratch']
  %s0 = inlined_call_operand.vmem [shape: bf16[128,256], index: 0, kind: input, shape index: {}]
  %s1 = inlined_call_operand.vmem [shape: bf16[256,128], index: 1, kind: input, shape index: {}]
  %s2 = inlined_call_operand.vmem [shape: f32[1,128], index: 2, kind: input, shape index: {}]
  %s3 = inlined_call_operand.vmem [shape: f32[1,128], index: 3, kind: input, shape index: {}]
  %s4 = inlined_call_operand.vmem [shape: f32[128,128], index: 4, kind: output, shape index: {}]
  %s5 = sld [smem:[#allocation0]]
  $region26: #{gan_a_forward.21} parent=0
    _
  %s7 = ssub.s32 1, %s5
  %s8 = scalar_select 0, %s7, %s5
  // Predicated region
  $region2: #{gan_a_forward.21} parent=0 // pred_check
    _
  $region3: #{gan_a_forward.21} parent=0 // pred_check_branch
    %10 = sbr.rel (0) target = $region5
  $region4: #{gan_a_forward.21} parent=0 // pred_region
    _
  $region5: #{gan_a_forward.21} parent=0 // pred_fallthru
    _
  // Predicated region
  $region6: #{gan_a_forward.21} parent=0 // pred_check
    _
  $region7: #{gan_a_forward.21} parent=0 // pred_check_branch
    %12 = sbr.rel (0) target = $region9
  $region8: #{gan_a_forward.21} parent=0 // pred_region
    _
  $region9: #{gan_a_forward.21} parent=0 // pred_fallthru
    _
  // Predicated region
  $region10: #{gan_a_forward.21} parent=0 // pred_check
    _
  $region11: #{gan_a_forward.21} parent=0 // pred_check_branch
    %14 = sbr.rel (0) target = $region13
  $region12: #{gan_a_forward.21} parent=0 // pred_region
    _
  $region13: #{gan_a_forward.21} parent=0 // pred_fallthru
    _
  // Predicated region
  $region14: #{gan_a_forward.21} parent=0 // pred_check
    _
  $region15: #{gan_a_forward.21} parent=0 // pred_check_branch
    %16 = sbr.rel (0) target = $region17
  $region16: #{gan_a_forward.21} parent=0 // pred_region
    _
  $region17: #{gan_a_forward.21} parent=0 // pred_fallthru
    _
  %v18 = vld [vmem:[%s0] sm:$0xff]
  %v19 = vld [vmem:[%s0 + $0x8] sm:$0xff]
  %v20 = vld [vmem:[%s0 + $0x10] sm:$0xff]
  %v21 = vld [vmem:[%s0 + $0x18] sm:$0xff]
  %v22 = vld [vmem:[%s0 + $0x20] sm:$0xff]
  %v23 = vld [vmem:[%s0 + $0x28] sm:$0xff]
  %v24 = vld [vmem:[%s0 + $0x30] sm:$0xff]
  %v25 = vld [vmem:[%s0 + $0x38] sm:$0xff]
  %v26 = vld [vmem:[%s0 + $0x40] sm:$0xff]
  %v27 = vld [vmem:[%s0 + $0x48] sm:$0xff]
  %v28 = vld [vmem:[%s0 + $0x50] sm:$0xff]
  %v29 = vld [vmem:[%s0 + $0x58] sm:$0xff]
  %v30 = vld [vmem:[%s0 + $0x60] sm:$0xff]
  %v31 = vld [vmem:[%s0 + $0x68] sm:$0xff]
  %v32 = vld [vmem:[%s0 + $0x70] sm:$0xff]
  %v33 = vld [vmem:[%s0 + $0x78] sm:$0xff]
  %v34 = vld [vmem:[%s1] sm:$0xf]
  %v35 = vld [vmem:[%s1 + $0x4] sm:$0xf]
  %v36 = vld [vmem:[%s1 + $0x8] sm:$0xf]
  %v37 = vld [vmem:[%s1 + $0xc] sm:$0xf]
  %v38 = vld [vmem:[%s1 + $0x10] sm:$0xf]
  %v39 = vld [vmem:[%s1 + $0x14] sm:$0xf]
  %v40 = vld [vmem:[%s1 + $0x18] sm:$0xf]
  %v41 = vld [vmem:[%s1 + $0x1c] sm:$0xf]
  %v42 = vld [vmem:[%s1 + $0x20] sm:$0xf]
  %v43 = vld [vmem:[%s1 + $0x24] sm:$0xf]
  %v44 = vld [vmem:[%s1 + $0x28] sm:$0xf]
  %v45 = vld [vmem:[%s1 + $0x2c] sm:$0xf]
  %v46 = vld [vmem:[%s1 + $0x30] sm:$0xf]
  %v47 = vld [vmem:[%s1 + $0x34] sm:$0xf]
  %v48 = vld [vmem:[%s1 + $0x38] sm:$0xf]
  %v49 = vld [vmem:[%s1 + $0x3c] sm:$0xf]
  %v50 = vld [vmem:[%s1 + $0x40] sm:$0xf]
  %v51 = vld [vmem:[%s1 + $0x44] sm:$0xf]
  %v52 = vld [vmem:[%s1 + $0x48] sm:$0xf]
  %v53 = vld [vmem:[%s1 + $0x4c] sm:$0xf]
  %v54 = vld [vmem:[%s1 + $0x50] sm:$0xf]
  %v55 = vld [vmem:[%s1 + $0x54] sm:$0xf]
  %v56 = vld [vmem:[%s1 + $0x58] sm:$0xf]
  %v57 = vld [vmem:[%s1 + $0x5c] sm:$0xf]
  %v58 = vld [vmem:[%s1 + $0x60] sm:$0xf]
  %v59 = vld [vmem:[%s1 + $0x64] sm:$0xf]
  %v60 = vld [vmem:[%s1 + $0x68] sm:$0xf]
  %v61 = vld [vmem:[%s1 + $0x6c] sm:$0xf]
  %v62 = vld [vmem:[%s1 + $0x70] sm:$0xf]
  %v63 = vld [vmem:[%s1 + $0x74] sm:$0xf]
  %v64 = vld [vmem:[%s1 + $0x78] sm:$0xf]
  %v65 = vld [vmem:[%s1 + $0x7c] sm:$0xf]
  %v82 = vunpack.c.l.b16 %v18
  %v83 = vunpack.c.h.b16 %v18
  %v84 = vunpack.c.l.b16 %v19
  %v85 = vunpack.c.h.b16 %v19
  %v86 = vunpack.c.l.b16 %v20
  %v87 = vunpack.c.h.b16 %v20
  %v88 = vunpack.c.l.b16 %v21
  %v89 = vunpack.c.h.b16 %v21
  %v90 = vunpack.c.l.b16 %v22
  %v91 = vunpack.c.h.b16 %v22
  %v92 = vunpack.c.l.b16 %v23
  %v93 = vunpack.c.h.b16 %v23
  %v94 = vunpack.c.l.b16 %v24
  %v95 = vunpack.c.h.b16 %v24
  %v96 = vunpack.c.l.b16 %v25
  %v97 = vunpack.c.h.b16 %v25
  %v98 = vunpack.c.l.b16 %v26
  %v99 = vunpack.c.h.b16 %v26
  %v100 = vunpack.c.l.b16 %v27
  %v101 = vunpack.c.h.b16 %v27
  %v102 = vunpack.c.l.b16 %v28
  %v103 = vunpack.c.h.b16 %v28
  %v104 = vunpack.c.l.b16 %v29
  %v105 = vunpack.c.h.b16 %v29
  %v106 = vunpack.c.l.b16 %v30
  %v107 = vunpack.c.h.b16 %v30
  %v108 = vunpack.c.l.b16 %v31
  %v109 = vunpack.c.h.b16 %v31
  %v110 = vunpack.c.l.b16 %v32
  %v111 = vunpack.c.h.b16 %v32
  %v112 = vunpack.c.l.b16 %v33
  %v113 = vunpack.c.h.b16 %v33
  %v114 = vpack.c.b16 %v84, %v82
  %v115 = vpack.c.b16 %v85, %v83
  %v116 = vpack.c.b16 %v88, %v86
  %v117 = vpack.c.b16 %v89, %v87
  %v118 = vpack.c.b16 %v92, %v90
  %v119 = vpack.c.b16 %v93, %v91
  %v120 = vpack.c.b16 %v96, %v94
  %v121 = vpack.c.b16 %v97, %v95
  %v122 = vpack.c.b16 %v100, %v98
  %v123 = vpack.c.b16 %v101, %v99
  %v124 = vpack.c.b16 %v104, %v102
  %v125 = vpack.c.b16 %v105, %v103
  %v126 = vpack.c.b16 %v108, %v106
  %v127 = vpack.c.b16 %v109, %v107
  %v128 = vpack.c.b16 %v112, %v110
  %v129 = vpack.c.b16 %v113, %v111
  %v178 = vunpack.c.l.b16 %v34
  %v179 = vunpack.c.l.b16 %v35
  %v180 = vunpack.c.l.b16 %v36
  %v181 = vunpack.c.l.b16 %v37
  %v182 = vunpack.c.l.b16 %v38
  %v183 = vunpack.c.l.b16 %v39
  %v184 = vunpack.c.l.b16 %v40
  %v185 = vunpack.c.l.b16 %v41
  %v186 = vunpack.c.l.b16 %v42
  %v187 = vunpack.c.l.b16 %v43
  %v188 = vunpack.c.l.b16 %v44
  %v189 = vunpack.c.l.b16 %v45
  %v190 = vunpack.c.l.b16 %v46
  %v191 = vunpack.c.l.b16 %v47
  %v192 = vunpack.c.l.b16 %v48
  %v193 = vunpack.c.l.b16 %v49
  %v194 = vunpack.c.l.b16 %v50
  %v195 = vunpack.c.l.b16 %v51
  %v196 = vunpack.c.l.b16 %v52
  %v197 = vunpack.c.l.b16 %v53
  %v198 = vunpack.c.l.b16 %v54
  %v199 = vunpack.c.l.b16 %v55
  %v200 = vunpack.c.l.b16 %v56
  %v201 = vunpack.c.l.b16 %v57
  %v202 = vunpack.c.l.b16 %v58
  %v203 = vunpack.c.l.b16 %v59
  %v204 = vunpack.c.l.b16 %v60
  %v205 = vunpack.c.l.b16 %v61
  %v206 = vunpack.c.l.b16 %v62
  %v207 = vunpack.c.l.b16 %v63
  %v208 = vunpack.c.l.b16 %v64
  %v209 = vunpack.c.l.b16 %v65
  %v210 = vpack.c.b16 %v179, %v178
  %v211 = vpack.c.b16 %v181, %v180
  %v212 = vpack.c.b16 %v183, %v182
  %v213 = vpack.c.b16 %v185, %v184
  %v214 = vpack.c.b16 %v187, %v186
  %v215 = vpack.c.b16 %v189, %v188
  %v216 = vpack.c.b16 %v191, %v190
  %v217 = vpack.c.b16 %v193, %v192
  %v218 = vpack.c.b16 %v195, %v194
  %v219 = vpack.c.b16 %v197, %v196
  %v220 = vpack.c.b16 %v199, %v198
  %v221 = vpack.c.b16 %v201, %v200
  %v222 = vpack.c.b16 %v203, %v202
  %v223 = vpack.c.b16 %v205, %v204
  %v224 = vpack.c.b16 %v207, %v206
  %v225 = vpack.c.b16 %v209, %v208
  %242 = vmatprep.subr.bf16.mxu0 0
  %243 = vmatpush1.bf16.msra.mxu0 %v210
  %244 = vmatprep.subr.bf16.mxu0 0
  %245 = vmatpush1.bf16.msra.mxu0 %v211
  %246 = vmatprep.subr.bf16.mxu0 0
  %247 = vmatpush1.bf16.msra.mxu0 %v212
  %248 = vmatprep.subr.bf16.mxu0 0
  %249 = vmatpush1.bf16.msra.mxu0 %v213
  %250 = vmatprep.subr.bf16.mxu0 0
  %251 = vmatpush1.bf16.msra.mxu0 %v214
  %252 = vmatprep.subr.bf16.mxu0 0
  %253 = vmatpush1.bf16.msra.mxu0 %v215
  %254 = vmatprep.subr.bf16.mxu0 0
  %255 = vmatpush1.bf16.msra.mxu0 %v216
  %256 = vmatprep.subr.bf16.mxu0 0
  %257 = vmatpush1.bf16.msra.mxu0 %v217
  %258 = vmatprep.subr.bf16.mxu0 0
  %259 = vmatpush1.bf16.msra.mxu0 %v218
  %260 = vmatprep.subr.bf16.mxu0 0
  %261 = vmatpush1.bf16.msra.mxu0 %v219
  %262 = vmatprep.subr.bf16.mxu0 0
  %263 = vmatpush1.bf16.msra.mxu0 %v220
  %264 = vmatprep.subr.bf16.mxu0 0
  %265 = vmatpush1.bf16.msra.mxu0 %v221
  %266 = vmatprep.subr.bf16.mxu0 0
  %267 = vmatpush1.bf16.msra.mxu0 %v222
  %268 = vmatprep.subr.bf16.mxu0 0
  %269 = vmatpush1.bf16.msra.mxu0 %v223
  %270 = vmatprep.subr.bf16.mxu0 0
  %271 = vmatpush1.bf16.msra.mxu0 %v224
  %272 = vmatprep.subr.bf16.mxu0 0
  %273 = vmatpush1.bf16.msra.mxu0 %v225
  %274 = vmatprep.mubr.bf16.mxu0 %v115
  %275 = vmatmul.mubr.bf16.gmra.mrb[0].mxu0 %v114
  %v276 = vpop.f32.mrb[0].mxu0
  %v277 = vadd.f32 0.0, %v276
  %v278 = vpop.f32.mrb[0].mxu0
  %v279 = vpop.f32.mrb[0].mxu0
  %v280 = vadd.f32 0.0, %v279
  %v281 = vpop.f32.mrb[0].mxu0
  %282 = vmatprep.mubr.bf16.mxu0 %v117
  %283 = vmatmul.mubr.bf16.gmra.mrb[0].mxu0 %v116
  %v284 = vpop.f32.mrb[0].mxu0
  %v285 = vadd.f32 0.0, %v284
  %v286 = vpop.f32.mrb[0].mxu0
  %v287 = vpop.f32.mrb[0].mxu0
  %v288 = vadd.f32 0.0, %v287
  %v289 = vpop.f32.mrb[0].mxu0
  %290 = vmatprep.mubr.bf16.mxu0 %v119
  %291 = vmatmul.mubr.bf16.gmra.mrb[0].mxu0 %v118
  %v292 = vpop.f32.mrb[0].mxu0
  %v293 = vadd.f32 0.0, %v292
  %v294 = vpop.f32.mrb[0].mxu0
  %v295 = vpop.f32.mrb[0].mxu0
  %v296 = vadd.f32 0.0, %v295
  %v297 = vpop.f32.mrb[0].mxu0
  %298 = vmatprep.mubr.bf16.mxu0 %v121
  %299 = vmatmul.mubr.bf16.gmra.mrb[0].mxu0 %v120
  %v300 = vpop.f32.mrb[0].mxu0
  %v301 = vadd.f32 0.0, %v300
  %v302 = vpop.f32.mrb[0].mxu0
  %v303 = vpop.f32.mrb[0].mxu0
  %v304 = vadd.f32 0.0, %v303
  %v305 = vpop.f32.mrb[0].mxu0
  %306 = vmatprep.mubr.bf16.mxu0 %v123
  %307 = vmatmul.mubr.bf16.gmra.mrb[0].mxu0 %v122
  %v308 = vpop.f32.mrb[0].mxu0
  %v309 = vadd.f32 0.0, %v308
  %v310 = vpop.f32.mrb[0].mxu0
  %v311 = vpop.f32.mrb[0].mxu0
  %v312 = vadd.f32 0.0, %v311
  %v313 = vpop.f32.mrb[0].mxu0
  %314 = vmatprep.mubr.bf16.mxu0 %v125
  %315 = vmatmul.mubr.bf16.gmra.mrb[0].mxu0 %v124
  %v316 = vpop.f32.mrb[0].mxu0
  %v317 = vadd.f32 0.0, %v316
  %v318 = vpop.f32.mrb[0].mxu0
  %v319 = vpop.f32.mrb[0].mxu0
  %v320 = vadd.f32 0.0, %v319
  %v321 = vpop.f32.mrb[0].mxu0
  %322 = vmatprep.mubr.bf16.mxu0 %v127
  %323 = vmatmul.mubr.bf16.gmra.mrb[0].mxu0 %v126
  %v324 = vpop.f32.mrb[0].mxu0
  %v325 = vadd.f32 0.0, %v324
  %v326 = vpop.f32.mrb[0].mxu0
  %v327 = vpop.f32.mrb[0].mxu0
  %v328 = vadd.f32 0.0, %v327
  %v329 = vpop.f32.mrb[0].mxu0
  %330 = vmatprep.mubr.bf16.mxu0 %v129
  %331 = vmatmul.mubr.bf16.gmra.mrb[0].mxu0 %v128
  %v332 = vpop.f32.mrb[0].mxu0
  %v333 = vadd.f32 0.0, %v332
  %v334 = vpop.f32.mrb[0].mxu0
  %v335 = vpop.f32.mrb[0].mxu0
  %v336 = vadd.f32 0.0, %v335
  %v337 = vpop.f32.mrb[0].mxu0
  %338 = vdwg.mxu0
  %v339 = vld [vmem:[%s2] sm:$0x1]
  %v341 = vlaneseq
  %v342 = vshrl.u32 %v341, 7
  %v343 = vsub.s32 0, %v342
  %v344 = vrot.slane %v339, %v343
  %v346 = vmul.f32 %v277, %v344
  %v347 = vmul.f32 %v280, %v344
  %v348 = vmul.f32 %v285, %v344
  %v349 = vmul.f32 %v288, %v344
  %v350 = vmul.f32 %v293, %v344
  %v351 = vmul.f32 %v296, %v344
  %v352 = vmul.f32 %v301, %v344
  %v353 = vmul.f32 %v304, %v344
  %v354 = vmul.f32 %v309, %v344
  %v355 = vmul.f32 %v312, %v344
  %v356 = vmul.f32 %v317, %v344
  %v357 = vmul.f32 %v320, %v344
  %v358 = vmul.f32 %v325, %v344
  %v359 = vmul.f32 %v328, %v344
  %v360 = vmul.f32 %v333, %v344
  %v361 = vmul.f32 %v336, %v344
  %v362 = vld [vmem:[%s3] sm:$0x1]
  %v364 = vlaneseq
  %v365 = vshrl.u32 %v364, 7
  %v366 = vsub.s32 0, %v365
  %v367 = vrot.slane %v362, %v366
  %v369 = vadd.f32 %v346, %v367
  %v370 = vadd.f32 %v347, %v367
  %v371 = vadd.f32 %v348, %v367
  %v372 = vadd.f32 %v349, %v367
  %v373 = vadd.f32 %v350, %v367
  %v374 = vadd.f32 %v351, %v367
  %v375 = vadd.f32 %v352, %v367
  %v376 = vadd.f32 %v353, %v367
  %v377 = vadd.f32 %v354, %v367
  %v378 = vadd.f32 %v355, %v367
  %v379 = vadd.f32 %v356, %v367
  %v380 = vadd.f32 %v357, %v367
  %v381 = vadd.f32 %v358, %v367
  %v382 = vadd.f32 %v359, %v367
  %v383 = vadd.f32 %v360, %v367
  %v384 = vadd.f32 %v361, %v367
  %v385 = vtanh.pop %v369
  %v386 = vtanh.pop %v370
  %v387 = vtanh.pop %v371
  %v388 = vtanh.pop %v372
  %v389 = vtanh.pop %v373
  %v390 = vtanh.pop %v374
  %v391 = vtanh.pop %v375
  %v392 = vtanh.pop %v376
  %v393 = vtanh.pop %v377
  %v394 = vtanh.pop %v378
  %v395 = vtanh.pop %v379
  %v396 = vtanh.pop %v380
  %v397 = vtanh.pop %v381
  %v398 = vtanh.pop %v382
  %v399 = vtanh.pop %v383
  %v400 = vtanh.pop %v384
  %401 = vst [vmem:[%s4] sm:$0xff] %v385
  %402 = vst [vmem:[%s4 + $0x8] sm:$0xff] %v386
  %403 = vst [vmem:[%s4 + $0x10] sm:$0xff] %v387
  %404 = vst [vmem:[%s4 + $0x18] sm:$0xff] %v388
  %405 = vst [vmem:[%s4 + $0x20] sm:$0xff] %v389
  %406 = vst [vmem:[%s4 + $0x28] sm:$0xff] %v390
  %407 = vst [vmem:[%s4 + $0x30] sm:$0xff] %v391
  %408 = vst [vmem:[%s4 + $0x38] sm:$0xff] %v392
  %409 = vst [vmem:[%s4 + $0x40] sm:$0xff] %v393
  %410 = vst [vmem:[%s4 + $0x48] sm:$0xff] %v394
  %411 = vst [vmem:[%s4 + $0x50] sm:$0xff] %v395
  %412 = vst [vmem:[%s4 + $0x58] sm:$0xff] %v396
  %413 = vst [vmem:[%s4 + $0x60] sm:$0xff] %v397
  %414 = vst [vmem:[%s4 + $0x68] sm:$0xff] %v398
  %415 = vst [vmem:[%s4 + $0x70] sm:$0xff] %v399
  %416 = vst [vmem:[%s4 + $0x78] sm:$0xff] %v400
  // Predicated region
  $region18: #{gan_a_forward.21} parent=0 // pred_check
    _
  $region19: #{gan_a_forward.21} parent=0 // pred_check_branch
    %418 = sbr.rel (0) target = $region21
  $region20: #{gan_a_forward.21} parent=0 // pred_region
    _
  $region21: #{gan_a_forward.21} parent=0 // pred_fallthru
    _
  // Predicated region
  $region22: #{gan_a_forward.21} parent=0 // pred_check
    _
  $region23: #{gan_a_forward.21} parent=0 // pred_check_branch
    %420 = sbr.rel (0) target = $region25
  $region24: #{gan_a_forward.21} parent=0 // pred_region
    _
  $region25: #{gan_a_forward.21} parent=0 // pred_fallthru
    _

</llo_original>
